<compile_context>
chip_gen: v7x
topology: tpu7x:2x2x1
jax: 0.10.0
libtpu: 0.0.40
codegen_flags: <defaults>
</compile_context>

<pallas_src>
import functools

import jax
import jax.numpy as jnp
from jax import lax
from jax.experimental import pallas as pl
from jax.experimental.pallas import tpu as pltpu


def _encoder_block_kernel(x_ref, g1_ref, b1_ref, wqkv_ref, bqkv_ref,
                          wp_ref, bp_ref, g2_ref, b2_ref, o_ref,
                          *, num_heads, head_size, eps):
    _, N, E = x_ref.shape
    x = x_ref[0].astype(jnp.float32)                       # (N, E)

    # ---- LayerNorm (attention_norm), f32 statistics ----
    mean = jnp.mean(x, axis=-1, keepdims=True)
    var = jnp.mean(jnp.square(x - mean), axis=-1, keepdims=True)
    xn = (x - mean) * lax.rsqrt(var + eps)
    xn = xn * g1_ref[0] + b1_ref[0]                        # (N, E)

    # ---- Fused QKV projection: one MXU matmul, bf16 in / f32 accumulate ----
    qkv = jnp.dot(xn.astype(jnp.bfloat16), wqkv_ref[...],
                  preferred_element_type=jnp.float32) + bqkv_ref[0]   # (N, 3E) f32
    qkv = qkv.astype(jnp.bfloat16)

    # ---- Multi-head self attention, per-head output-projection fold ----
    scaling = head_size ** (-0.5)
    acc = jnp.zeros((N, E), jnp.float32)
    for h in range(num_heads):                             # static unroll; acc bounds liveness
        lo = h * head_size
        q_h = qkv[:, lo:lo + head_size]                    # (N, d)
        k_h = qkv[:, E + lo:E + lo + head_size]            # (N, d)
        v_h = qkv[:, 2 * E + lo:2 * E + lo + head_size]    # (N, d)

        # scores: contract the head dim of both operands (no kh.T materialized)
        s = lax.dot_general(q_h, k_h, (((1,), (1,)), ((), ())),
                            preferred_element_type=jnp.float32) * scaling   # (N, N)
        s = s - jnp.max(s, axis=-1, keepdims=True)
        p = jnp.exp(s)
        p = p * pl.reciprocal(jnp.sum(p, axis=-1, keepdims=True), approx=True)

        o_h = jnp.dot(p.astype(jnp.bfloat16), v_h,
                      preferred_element_type=jnp.float32)                    # (N, d)
        # fold this head's slice of the output projection (removes the concat)
        acc += jnp.dot(o_h.astype(jnp.bfloat16), wp_ref[lo:lo + head_size, :],
                       preferred_element_type=jnp.float32)                   # (N, E)

    # attn_dropout -> identity (eval); projection bias; residual
    y1 = x + acc + bp_ref[0]                               # (N, E)

    # ---- LayerNorm (mlp_norm), f32 statistics ----
    m2 = jnp.mean(y1, axis=-1, keepdims=True)
    v2 = jnp.mean(jnp.square(y1 - m2), axis=-1, keepdims=True)
    y1n = (y1 - m2) * lax.rsqrt(v2 + eps) * g2_ref[0] + b2_ref[0]

    # FeedForwardBlock.forward returns its input -> mlp(y1n) == y1n (weights unused)
    # TODO(synk): FFN weights (Linear/GELU/Dropout) are dead code in the reference forward.
    o_ref[0] = (y1 + y1n).astype(o_ref.dtype)


def transformer_encoder_block(x, params, *, num_heads, eps=1e-5):
    B, N, E = x.shape
    assert E % num_heads == 0
    head_size = E // num_heads

    # Fuse Q/K/V weights host-side; cast matmul weights to bf16 (f32 accumulation
    # happens in-kernel); biases / LayerNorm params stay f32.
    wqkv = jnp.concatenate([params["wq"], params["wk"], params["wv"]],
                           axis=1).astype(jnp.bfloat16)                 # (E, 3E)
    bqkv = jnp.concatenate([params["bq"], params["bk"], params["bv"]],
                           axis=1).astype(jnp.float32)                  # (1, 3E)
    wp = params["wp"].astype(jnp.bfloat16)                              # (E, E)

    kernel = functools.partial(
        _encoder_block_kernel,
        num_heads=num_heads, head_size=head_size, eps=eps)

    x_spec = pl.BlockSpec((1, N, E), lambda b: (b, 0, 0))
    e_vec = pl.BlockSpec((1, E), lambda b: (0, 0))

    itemsize = jnp.dtype(x.dtype).itemsize
    flops = B * (8 * N * E * E + 4 * N * N * E)            # qkv + scores + p@v + proj
    transcendentals = B * num_heads * N * N                # softmax exp
    bytes_accessed = (2 * B * N * E * itemsize             # x in + out
                      + 4 * E * E * 2                      # bf16 weights
                      + 8 * E * 4)                         # biases + LN params

    return pl.pallas_call(
        kernel,
        out_shape=jax.ShapeDtypeStruct((B, N, E), x.dtype),
        grid=(B,),
        in_specs=[
            x_spec,
            e_vec, e_vec,                                  # ln1 gamma, beta
            pl.BlockSpec((E, 3 * E), lambda b: (0, 0)),    # fused Wqkv (bf16)
            pl.BlockSpec((1, 3 * E), lambda b: (0, 0)),    # fused qkv bias (f32)
            pl.BlockSpec((E, E), lambda b: (0, 0)),        # Wproj (bf16)
            e_vec,                                         # bproj
            e_vec, e_vec,                                  # ln2 gamma, beta
        ],
        out_specs=x_spec,
        compiler_params=pltpu.CompilerParams(
            dimension_semantics=("parallel",),
            vmem_limit_bytes=32 * 1024 * 1024),
        cost_estimate=pl.CostEstimate(flops=flops,
                                      transcendentals=transcendentals,
                                      bytes_accessed=bytes_accessed),
    )(x,
      params["g1"], params["b1"],
      wqkv, bqkv,
      wp, params["bp"],
      params["g2"], params["b2"])


def _reference(x, params, *, num_heads, eps=1e-5):
    """Plain-JAX f32 mirror of the PyTorch forward (for correctness check)."""
    B, N, E = x.shape
    d = E // num_heads

    def ln(z, g, b):
        m = jnp.mean(z, axis=-1, keepdims=True)
        v = jnp.mean((z - m) ** 2, axis=-1, keepdims=True)
        return (z - m) / jnp.sqrt(v + eps) * g + b

    h = x
    xn = ln(x, params["g1"][0], params["b1"][0])
    q = xn @ params["wq"] + params["bq"][0]
    k = xn @ params["wk"] + params["bk"][0]
    v = xn @ params["wv"] + params["bv"][0]
    q = q.reshape(B, N, num_heads, d).transpose(0, 2, 1, 3)
    k = k.reshape(B, N, num_heads, d).transpose(0, 2, 1, 3)
    v = v.reshape(B, N, num_heads, d).transpose(0, 2, 1, 3)
    s = jnp.einsum("bhqd,bhkd->bhqk", q, k) * (d ** -0.5)
    p = jax.nn.softmax(s, axis=-1)
    o = jnp.einsum("bhqk,bhkd->bhqd", p, v).transpose(0, 2, 1, 3).reshape(B, N, E)
    o = o @ params["wp"] + params["bp"][0]
    y1 = h + o
    y1n = ln(y1, params["g2"][0], params["b2"][0])
    return y1 + y1n  # FFN returns its input -> identity


if __name__ == "__main__":
    # Small shapes consistent with the module: (batch, seq, emb)
    B, N, E, H = 2, 8, 32, 4
    key = jax.random.PRNGKey(0)
    keys = jax.random.split(key, 12)

    def w(k):  # PyTorch Linear weight (out,in) -> stored pre-transposed as (in,out)
        return jax.random.normal(k, (E, E), jnp.float32) * 0.05

    params = {
        "g1": 1.0 + 0.1 * jax.random.normal(keys[0], (1, E), jnp.float32),
        "b1": 0.05 * jax.random.normal(keys[1], (1, E), jnp.float32),
        "wq": w(keys[2]), "bq": 0.01 * jax.random.normal(keys[3], (1, E), jnp.float32),
        "wk": w(keys[4]), "bk": 0.01 * jax.random.normal(keys[5], (1, E), jnp.float32),
        "wv": w(keys[6]), "bv": 0.01 * jax.random.normal(keys[7], (1, E), jnp.float32),
        "wp": w(keys[8]), "bp": 0.01 * jax.random.normal(keys[9], (1, E), jnp.float32),
        "g2": 1.0 + 0.1 * jax.random.normal(keys[10], (1, E), jnp.float32),
        "b2": 0.05 * jax.random.normal(keys[11], (1, E), jnp.float32),
    }

    x = jax.random.normal(jax.random.PRNGKey(42), (B, N, E), jnp.float32)

    out = transformer_encoder_block(x, params, num_heads=H)
    out = jax.block_until_ready(out)

    ref = _reference(x, params, num_heads=H)
    err = jnp.max(jnp.abs(out - ref))
    # bf16 MXU inputs/weights (f32 accumulation, f32 LN/softmax stats) ->
    # tolerance appropriate for bf16 rounding vs. the f32 reference.
    assert jnp.allclose(out, ref, rtol=2e-2, atol=2e-2), \
        f"mismatch vs reference (max abs err {err})"

    print("KERNEL_OK")
</pallas_src>

<mosaic_0001>
module attributes {stable_mosaic.version = 11 : i64} {
  func.func @_encoder_block_kernel(%arg0: i32, %arg1: memref<1x8x32xf32, #tpu.memory_space<vmem>>, %arg2: memref<1x32xf32, #tpu.memory_space<vmem>>, %arg3: memref<1x32xf32, #tpu.memory_space<vmem>>, %arg4: memref<32x96xbf16, #tpu.memory_space<vmem>>, %arg5: memref<1x96xf32, #tpu.memory_space<vmem>>, %arg6: memref<32x32xbf16, #tpu.memory_space<vmem>>, %arg7: memref<1x32xf32, #tpu.memory_space<vmem>>, %arg8: memref<1x32xf32, #tpu.memory_space<vmem>>, %arg9: memref<1x32xf32, #tpu.memory_space<vmem>>, %arg10: memref<1x8x32xf32, #tpu.memory_space<vmem>>) attributes {dimension_semantics = [#tpu.dimension_semantics<parallel>], iteration_bounds = array<i64: 2>, scalar_prefetch = 0 : i64, scratch_operands = 0 : i64, tpu.core_type = #tpu.core_type<tc>, window_params = [{transform_indices = @transform_0, window_bounds = array<i64: 1, 8, 32>}, {pipeline_mode = #tpu.pipeline_mode<synchronous>, transform_indices = @transform_1, window_bounds = array<i64: 1, 32>}, {pipeline_mode = #tpu.pipeline_mode<synchronous>, transform_indices = @transform_2, window_bounds = array<i64: 1, 32>}, {pipeline_mode = #tpu.pipeline_mode<synchronous>, transform_indices = @transform_3, window_bounds = array<i64: 32, 96>}, {pipeline_mode = #tpu.pipeline_mode<synchronous>, transform_indices = @transform_4, window_bounds = array<i64: 1, 96>}, {pipeline_mode = #tpu.pipeline_mode<synchronous>, transform_indices = @transform_5, window_bounds = array<i64: 32, 32>}, {pipeline_mode = #tpu.pipeline_mode<synchronous>, transform_indices = @transform_6, window_bounds = array<i64: 1, 32>}, {pipeline_mode = #tpu.pipeline_mode<synchronous>, transform_indices = @transform_7, window_bounds = array<i64: 1, 32>}, {pipeline_mode = #tpu.pipeline_mode<synchronous>, transform_indices = @transform_8, window_bounds = array<i64: 1, 32>}, {transform_indices = @transform_9, window_bounds = array<i64: 1, 8, 32>}]} {
    %c0 = arith.constant 0 : index
    %c0_0 = arith.constant 0 : index
    %c0_1 = arith.constant 0 : index
    %0 = vector.load %arg1[%c0, %c0_0, %c0_1] : memref<1x8x32xf32, #tpu.memory_space<vmem>>, vector<1x8x32xf32>
    %1 = vector.shape_cast %0 : vector<1x8x32xf32> to vector<8x32xf32>
    %cst = arith.constant dense<0.000000e+00> : vector<8xf32>
    %2 = vector.multi_reduction <add>, %1, %cst [1] : vector<8x32xf32> to vector<8xf32>
    %3 = vector.shape_cast %2 : vector<8xf32> to vector<8x1xf32>
    %cst_2 = arith.constant 3.200000e+01 : f32
    %4 = vector.broadcast %cst_2 : f32 to vector<8x1xf32>
    %5 = arith.divf %3, %4 : vector<8x1xf32>
    %6 = vector.broadcast %5 : vector<8x1xf32> to vector<8x32xf32>
    %7 = arith.subf %1, %6 : vector<8x32xf32>
    %8 = arith.mulf %7, %7 : vector<8x32xf32>
    %cst_3 = arith.constant dense<0.000000e+00> : vector<8xf32>
    %9 = vector.multi_reduction <add>, %8, %cst_3 [1] : vector<8x32xf32> to vector<8xf32>
    %10 = vector.shape_cast %9 : vector<8xf32> to vector<8x1xf32>
    %cst_4 = arith.constant 3.200000e+01 : f32
    %11 = vector.broadcast %cst_4 : f32 to vector<8x1xf32>
    %12 = arith.divf %10, %11 : vector<8x1xf32>
    %13 = vector.broadcast %5 : vector<8x1xf32> to vector<8x32xf32>
    %14 = arith.subf %1, %13 : vector<8x32xf32>
    %cst_5 = arith.constant 9.99999974E-6 : f32
    %15 = vector.broadcast %cst_5 : f32 to vector<8x1xf32>
    %16 = arith.addf %12, %15 : vector<8x1xf32>
    %17 = math.rsqrt %16 : vector<8x1xf32>
    %18 = vector.broadcast %17 : vector<8x1xf32> to vector<8x32xf32>
    %19 = arith.mulf %14, %18 : vector<8x32xf32>
    %c0_6 = arith.constant 0 : index
    %c0_7 = arith.constant 0 : index
    %20 = vector.load %arg2[%c0_6, %c0_7] : memref<1x32xf32, #tpu.memory_space<vmem>>, vector<1x32xf32>
    %21 = vector.shape_cast %20 : vector<1x32xf32> to vector<32xf32>
    %22 = vector.shape_cast %21 : vector<32xf32> to vector<1x32xf32>
    %23 = vector.broadcast %22 : vector<1x32xf32> to vector<8x32xf32>
    %24 = arith.mulf %19, %23 : vector<8x32xf32>
    %c0_8 = arith.constant 0 : index
    %c0_9 = arith.constant 0 : index
    %25 = vector.load %arg3[%c0_8, %c0_9] : memref<1x32xf32, #tpu.memory_space<vmem>>, vector<1x32xf32>
    %26 = vector.shape_cast %25 : vector<1x32xf32> to vector<32xf32>
    %27 = vector.shape_cast %26 : vector<32xf32> to vector<1x32xf32>
    %28 = vector.broadcast %27 : vector<1x32xf32> to vector<8x32xf32>
    %29 = arith.addf %24, %28 : vector<8x32xf32>
    %30 = arith.truncf %29 : vector<8x32xf32> to vector<8x32xbf16>
    %c0_10 = arith.constant 0 : index
    %c0_11 = arith.constant 0 : index
    %31 = vector.load %arg4[%c0_10, %c0_11] : memref<32x96xbf16, #tpu.memory_space<vmem>>, vector<32x96xbf16>
    %cst_12 = arith.constant dense<0.000000e+00> : vector<8x96xf32>
    %32 = tpu.matmul %30, %31, %cst_12 {dimension_numbers = #tpu.dot_dimension_numbers<[1], [0], [0], [1], [0, 0, 1, 1], [], []>} : vector<8x32xbf16>, vector<32x96xbf16>, vector<8x96xf32> -> vector<8x96xf32>
    %c0_13 = arith.constant 0 : index
    %c0_14 = arith.constant 0 : index
    %33 = vector.load %arg5[%c0_13, %c0_14] : memref<1x96xf32, #tpu.memory_space<vmem>>, vector<1x96xf32>
    %34 = vector.shape_cast %33 : vector<1x96xf32> to vector<96xf32>
    %35 = vector.shape_cast %34 : vector<96xf32> to vector<1x96xf32>
    %36 = vector.broadcast %35 : vector<1x96xf32> to vector<8x96xf32>
    %37 = arith.addf %32, %36 : vector<8x96xf32>
    %38 = arith.truncf %37 : vector<8x96xf32> to vector<8x96xbf16>
    %cst_15 = arith.constant 0.000000e+00 : f32
    %39 = vector.broadcast %cst_15 : f32 to vector<8x32xf32>
    %40 = vector.extract_strided_slice %38 {offsets = [0, 0], sizes = [8, 8], strides = [1, 1]} : vector<8x96xbf16> to vector<8x8xbf16>
    %41 = vector.extract_strided_slice %38 {offsets = [0, 32], sizes = [8, 8], strides = [1, 1]} : vector<8x96xbf16> to vector<8x8xbf16>
    %42 = vector.extract_strided_slice %38 {offsets = [0, 64], sizes = [8, 8], strides = [1, 1]} : vector<8x96xbf16> to vector<8x8xbf16>
    %cst_16 = arith.constant dense<0.000000e+00> : vector<8x8xf32>
    %43 = tpu.matmul %40, %41, %cst_16 {dimension_numbers = #tpu.dot_dimension_numbers<[1], [1], [0], [0], [0, 0, 1, 0], [], []>} : vector<8x8xbf16>, vector<8x8xbf16>, vector<8x8xf32> -> vector<8x8xf32>
    %cst_17 = arith.constant 0.353553385 : f32
    %44 = vector.broadcast %cst_17 : f32 to vector<8x8xf32>
    %45 = arith.mulf %43, %44 : vector<8x8xf32>
    %cst_18 = arith.constant dense<0xFF800000> : vector<8xf32>
    %46 = vector.multi_reduction <maximumf>, %45, %cst_18 [1] : vector<8x8xf32> to vector<8xf32>
    %47 = vector.shape_cast %46 : vector<8xf32> to vector<8x1xf32>
    %48 = vector.broadcast %47 : vector<8x1xf32> to vector<8x8xf32>
    %49 = arith.subf %45, %48 : vector<8x8xf32>
    %50 = math.exp %49 : vector<8x8xf32>
    %cst_19 = arith.constant dense<0.000000e+00> : vector<8xf32>
    %51 = vector.multi_reduction <add>, %50, %cst_19 [1] : vector<8x8xf32> to vector<8xf32>
    %52 = vector.shape_cast %51 : vector<8xf32> to vector<8x1xf32>
    %53 = tpu.reciprocal %52 {approx = true} : vector<8x1xf32> -> vector<8x1xf32>
    %54 = vector.broadcast %53 : vector<8x1xf32> to vector<8x8xf32>
    %55 = arith.mulf %50, %54 : vector<8x8xf32>
    %56 = arith.truncf %55 : vector<8x8xf32> to vector<8x8xbf16>
    %cst_20 = arith.constant dense<0.000000e+00> : vector<8x8xf32>
    %57 = tpu.matmul %56, %42, %cst_20 {dimension_numbers = #tpu.dot_dimension_numbers<[1], [0], [0], [1], [0, 0, 1, 1], [], []>} : vector<8x8xbf16>, vector<8x8xbf16>, vector<8x8xf32> -> vector<8x8xf32>
    %58 = arith.truncf %57 : vector<8x8xf32> to vector<8x8xbf16>
    %c0_21 = arith.constant 0 : index
    %c0_22 = arith.constant 0 : index
    %59 = vector.load %arg6[%c0_21, %c0_22] : memref<32x32xbf16, #tpu.memory_space<vmem>>, vector<8x32xbf16>
    %cst_23 = arith.constant dense<0.000000e+00> : vector<8x32xf32>
    %60 = tpu.matmul %58, %59, %cst_23 {dimension_numbers = #tpu.dot_dimension_numbers<[1], [0], [0], [1], [0, 0, 1, 1], [], []>} : vector<8x8xbf16>, vector<8x32xbf16>, vector<8x32xf32> -> vector<8x32xf32>
    %61 = arith.addf %39, %60 : vector<8x32xf32>
    %62 = vector.extract_strided_slice %38 {offsets = [0, 8], sizes = [8, 8], strides = [1, 1]} : vector<8x96xbf16> to vector<8x8xbf16>
    %63 = vector.extract_strided_slice %38 {offsets = [0, 40], sizes = [8, 8], strides = [1, 1]} : vector<8x96xbf16> to vector<8x8xbf16>
    %64 = vector.extract_strided_slice %38 {offsets = [0, 72], sizes = [8, 8], strides = [1, 1]} : vector<8x96xbf16> to vector<8x8xbf16>
    %cst_24 = arith.constant dense<0.000000e+00> : vector<8x8xf32>
    %65 = tpu.matmul %62, %63, %cst_24 {dimension_numbers = #tpu.dot_dimension_numbers<[1], [1], [0], [0], [0, 0, 1, 0], [], []>} : vector<8x8xbf16>, vector<8x8xbf16>, vector<8x8xf32> -> vector<8x8xf32>
    %cst_25 = arith.constant 0.353553385 : f32
    %66 = vector.broadcast %cst_25 : f32 to vector<8x8xf32>
    %67 = arith.mulf %65, %66 : vector<8x8xf32>
    %cst_26 = arith.constant dense<0xFF800000> : vector<8xf32>
    %68 = vector.multi_reduction <maximumf>, %67, %cst_26 [1] : vector<8x8xf32> to vector<8xf32>
    %69 = vector.shape_cast %68 : vector<8xf32> to vector<8x1xf32>
    %70 = vector.broadcast %69 : vector<8x1xf32> to vector<8x8xf32>
    %71 = arith.subf %67, %70 : vector<8x8xf32>
    %72 = math.exp %71 : vector<8x8xf32>
    %cst_27 = arith.constant dense<0.000000e+00> : vector<8xf32>
    %73 = vector.multi_reduction <add>, %72, %cst_27 [1] : vector<8x8xf32> to vector<8xf32>
    %74 = vector.shape_cast %73 : vector<8xf32> to vector<8x1xf32>
    %75 = tpu.reciprocal %74 {approx = true} : vector<8x1xf32> -> vector<8x1xf32>
    %76 = vector.broadcast %75 : vector<8x1xf32> to vector<8x8xf32>
    %77 = arith.mulf %72, %76 : vector<8x8xf32>
    %78 = arith.truncf %77 : vector<8x8xf32> to vector<8x8xbf16>
    %cst_28 = arith.constant dense<0.000000e+00> : vector<8x8xf32>
    %79 = tpu.matmul %78, %64, %cst_28 {dimension_numbers = #tpu.dot_dimension_numbers<[1], [0], [0], [1], [0, 0, 1, 1], [], []>} : vector<8x8xbf16>, vector<8x8xbf16>, vector<8x8xf32> -> vector<8x8xf32>
    %80 = arith.truncf %79 : vector<8x8xf32> to vector<8x8xbf16>
    %c8 = arith.constant 8 : index
    %c0_29 = arith.constant 0 : index
    %81 = vector.load %arg6[%c8, %c0_29] : memref<32x32xbf16, #tpu.memory_space<vmem>>, vector<8x32xbf16>
    %cst_30 = arith.constant dense<0.000000e+00> : vector<8x32xf32>
    %82 = tpu.matmul %80, %81, %cst_30 {dimension_numbers = #tpu.dot_dimension_numbers<[1], [0], [0], [1], [0, 0, 1, 1], [], []>} : vector<8x8xbf16>, vector<8x32xbf16>, vector<8x32xf32> -> vector<8x32xf32>
    %83 = arith.addf %61, %82 : vector<8x32xf32>
    %84 = vector.extract_strided_slice %38 {offsets = [0, 16], sizes = [8, 8], strides = [1, 1]} : vector<8x96xbf16> to vector<8x8xbf16>
    %85 = vector.extract_strided_slice %38 {offsets = [0, 48], sizes = [8, 8], strides = [1, 1]} : vector<8x96xbf16> to vector<8x8xbf16>
    %86 = vector.extract_strided_slice %38 {offsets = [0, 80], sizes = [8, 8], strides = [1, 1]} : vector<8x96xbf16> to vector<8x8xbf16>
    %cst_31 = arith.constant dense<0.000000e+00> : vector<8x8xf32>
    %87 = tpu.matmul %84, %85, %cst_31 {dimension_numbers = #tpu.dot_dimension_numbers<[1], [1], [0], [0], [0, 0, 1, 0], [], []>} : vector<8x8xbf16>, vector<8x8xbf16>, vector<8x8xf32> -> vector<8x8xf32>
    %cst_32 = arith.constant 0.353553385 : f32
    %88 = vector.broadcast %cst_32 : f32 to vector<8x8xf32>
    %89 = arith.mulf %87, %88 : vector<8x8xf32>
    %cst_33 = arith.constant dense<0xFF800000> : vector<8xf32>
    %90 = vector.multi_reduction <maximumf>, %89, %cst_33 [1] : vector<8x8xf32> to vector<8xf32>
    %91 = vector.shape_cast %90 : vector<8xf32> to vector<8x1xf32>
    %92 = vector.broadcast %91 : vector<8x1xf32> to vector<8x8xf32>
    %93 = arith.subf %89, %92 : vector<8x8xf32>
    %94 = math.exp %93 : vector<8x8xf32>
    %cst_34 = arith.constant dense<0.000000e+00> : vector<8xf32>
    %95 = vector.multi_reduction <add>, %94, %cst_34 [1] : vector<8x8xf32> to vector<8xf32>
    %96 = vector.shape_cast %95 : vector<8xf32> to vector<8x1xf32>
    %97 = tpu.reciprocal %96 {approx = true} : vector<8x1xf32> -> vector<8x1xf32>
    %98 = vector.broadcast %97 : vector<8x1xf32> to vector<8x8xf32>
    %99 = arith.mulf %94, %98 : vector<8x8xf32>
    %100 = arith.truncf %99 : vector<8x8xf32> to vector<8x8xbf16>
    %cst_35 = arith.constant dense<0.000000e+00> : vector<8x8xf32>
    %101 = tpu.matmul %100, %86, %cst_35 {dimension_numbers = #tpu.dot_dimension_numbers<[1], [0], [0], [1], [0, 0, 1, 1], [], []>} : vector<8x8xbf16>, vector<8x8xbf16>, vector<8x8xf32> -> vector<8x8xf32>
    %102 = arith.truncf %101 : vector<8x8xf32> to vector<8x8xbf16>
    %c16 = arith.constant 16 : index
    %c0_36 = arith.constant 0 : index
    %103 = vector.load %arg6[%c16, %c0_36] : memref<32x32xbf16, #tpu.memory_space<vmem>>, vector<8x32xbf16>
    %cst_37 = arith.constant dense<0.000000e+00> : vector<8x32xf32>
    %104 = tpu.matmul %102, %103, %cst_37 {dimension_numbers = #tpu.dot_dimension_numbers<[1], [0], [0], [1], [0, 0, 1, 1], [], []>} : vector<8x8xbf16>, vector<8x32xbf16>, vector<8x32xf32> -> vector<8x32xf32>
    %105 = arith.addf %83, %104 : vector<8x32xf32>
    %106 = vector.extract_strided_slice %38 {offsets = [0, 24], sizes = [8, 8], strides = [1, 1]} : vector<8x96xbf16> to vector<8x8xbf16>
    %107 = vector.extract_strided_slice %38 {offsets = [0, 56], sizes = [8, 8], strides = [1, 1]} : vector<8x96xbf16> to vector<8x8xbf16>
    %108 = vector.extract_strided_slice %38 {offsets = [0, 88], sizes = [8, 8], strides = [1, 1]} : vector<8x96xbf16> to vector<8x8xbf16>
    %cst_38 = arith.constant dense<0.000000e+00> : vector<8x8xf32>
    %109 = tpu.matmul %106, %107, %cst_38 {dimension_numbers = #tpu.dot_dimension_numbers<[1], [1], [0], [0], [0, 0, 1, 0], [], []>} : vector<8x8xbf16>, vector<8x8xbf16>, vector<8x8xf32> -> vector<8x8xf32>
    %cst_39 = arith.constant 0.353553385 : f32
    %110 = vector.broadcast %cst_39 : f32 to vector<8x8xf32>
    %111 = arith.mulf %109, %110 : vector<8x8xf32>
    %cst_40 = arith.constant dense<0xFF800000> : vector<8xf32>
    %112 = vector.multi_reduction <maximumf>, %111, %cst_40 [1] : vector<8x8xf32> to vector<8xf32>
    %113 = vector.shape_cast %112 : vector<8xf32> to vector<8x1xf32>
    %114 = vector.broadcast %113 : vector<8x1xf32> to vector<8x8xf32>
    %115 = arith.subf %111, %114 : vector<8x8xf32>
    %116 = math.exp %115 : vector<8x8xf32>
    %cst_41 = arith.constant dense<0.000000e+00> : vector<8xf32>
    %117 = vector.multi_reduction <add>, %116, %cst_41 [1] : vector<8x8xf32> to vector<8xf32>
    %118 = vector.shape_cast %117 : vector<8xf32> to vector<8x1xf32>
    %119 = tpu.reciprocal %118 {approx = true} : vector<8x1xf32> -> vector<8x1xf32>
    %120 = vector.broadcast %119 : vector<8x1xf32> to vector<8x8xf32>
    %121 = arith.mulf %116, %120 : vector<8x8xf32>
    %122 = arith.truncf %121 : vector<8x8xf32> to vector<8x8xbf16>
    %cst_42 = arith.constant dense<0.000000e+00> : vector<8x8xf32>
    %123 = tpu.matmul %122, %108, %cst_42 {dimension_numbers = #tpu.dot_dimension_numbers<[1], [0], [0], [1], [0, 0, 1, 1], [], []>} : vector<8x8xbf16>, vector<8x8xbf16>, vector<8x8xf32> -> vector<8x8xf32>
    %124 = arith.truncf %123 : vector<8x8xf32> to vector<8x8xbf16>
    %c24 = arith.constant 24 : index
    %c0_43 = arith.constant 0 : index
    %125 = vector.load %arg6[%c24, %c0_43] : memref<32x32xbf16, #tpu.memory_space<vmem>>, vector<8x32xbf16>
    %cst_44 = arith.constant dense<0.000000e+00> : vector<8x32xf32>
    %126 = tpu.matmul %124, %125, %cst_44 {dimension_numbers = #tpu.dot_dimension_numbers<[1], [0], [0], [1], [0, 0, 1, 1], [], []>} : vector<8x8xbf16>, vector<8x32xbf16>, vector<8x32xf32> -> vector<8x32xf32>
    %127 = arith.addf %105, %126 : vector<8x32xf32>
    %128 = arith.addf %1, %127 : vector<8x32xf32>
    %c0_45 = arith.constant 0 : index
    %c0_46 = arith.constant 0 : index
    %129 = vector.load %arg7[%c0_45, %c0_46] : memref<1x32xf32, #tpu.memory_space<vmem>>, vector<1x32xf32>
    %130 = vector.shape_cast %129 : vector<1x32xf32> to vector<32xf32>
    %131 = vector.shape_cast %130 : vector<32xf32> to vector<1x32xf32>
    %132 = vector.broadcast %131 : vector<1x32xf32> to vector<8x32xf32>
    %133 = arith.addf %128, %132 : vector<8x32xf32>
    %cst_47 = arith.constant dense<0.000000e+00> : vector<8xf32>
    %134 = vector.multi_reduction <add>, %133, %cst_47 [1] : vector<8x32xf32> to vector<8xf32>
    %135 = vector.shape_cast %134 : vector<8xf32> to vector<8x1xf32>
    %cst_48 = arith.constant 3.200000e+01 : f32
    %136 = vector.broadcast %cst_48 : f32 to vector<8x1xf32>
    %137 = arith.divf %135, %136 : vector<8x1xf32>
    %138 = vector.broadcast %137 : vector<8x1xf32> to vector<8x32xf32>
    %139 = arith.subf %133, %138 : vector<8x32xf32>
    %140 = arith.mulf %139, %139 : vector<8x32xf32>
    %cst_49 = arith.constant dense<0.000000e+00> : vector<8xf32>
    %141 = vector.multi_reduction <add>, %140, %cst_49 [1] : vector<8x32xf32> to vector<8xf32>
    %142 = vector.shape_cast %141 : vector<8xf32> to vector<8x1xf32>
    %cst_50 = arith.constant 3.200000e+01 : f32
    %143 = vector.broadcast %cst_50 : f32 to vector<8x1xf32>
    %144 = arith.divf %142, %143 : vector<8x1xf32>
    %145 = vector.broadcast %137 : vector<8x1xf32> to vector<8x32xf32>
    %146 = arith.subf %133, %145 : vector<8x32xf32>
    %cst_51 = arith.constant 9.99999974E-6 : f32
    %147 = vector.broadcast %cst_51 : f32 to vector<8x1xf32>
    %148 = arith.addf %144, %147 : vector<8x1xf32>
    %149 = math.rsqrt %148 : vector<8x1xf32>
    %150 = vector.broadcast %149 : vector<8x1xf32> to vector<8x32xf32>
    %151 = arith.mulf %146, %150 : vector<8x32xf32>
    %c0_52 = arith.constant 0 : index
    %c0_53 = arith.constant 0 : index
    %152 = vector.load %arg8[%c0_52, %c0_53] : memref<1x32xf32, #tpu.memory_space<vmem>>, vector<1x32xf32>
    %153 = vector.shape_cast %152 : vector<1x32xf32> to vector<32xf32>
    %154 = vector.shape_cast %153 : vector<32xf32> to vector<1x32xf32>
    %155 = vector.broadcast %154 : vector<1x32xf32> to vector<8x32xf32>
    %156 = arith.mulf %151, %155 : vector<8x32xf32>
    %c0_54 = arith.constant 0 : index
    %c0_55 = arith.constant 0 : index
    %157 = vector.load %arg9[%c0_54, %c0_55] : memref<1x32xf32, #tpu.memory_space<vmem>>, vector<1x32xf32>
    %158 = vector.shape_cast %157 : vector<1x32xf32> to vector<32xf32>
    %159 = vector.shape_cast %158 : vector<32xf32> to vector<1x32xf32>
    %160 = vector.broadcast %159 : vector<1x32xf32> to vector<8x32xf32>
    %161 = arith.addf %156, %160 : vector<8x32xf32>
    %162 = arith.addf %133, %161 : vector<8x32xf32>
    %c0_56 = arith.constant 0 : index
    %c0_57 = arith.constant 0 : index
    %c0_58 = arith.constant 0 : index
    %163 = vector.load %arg10[%c0_56, %c0_57, %c0_58] : memref<1x8x32xf32, #tpu.memory_space<vmem>>, vector<1x8x32xf32>
    %164 = vector.shape_cast %163 : vector<1x8x32xf32> to vector<8x32xf32>
    %165 = vector.shape_cast %162 : vector<8x32xf32> to vector<1x8x32xf32>
    tpu.vector_store %arg10[%c0_56, %c0_57, %c0_58], %165 {strides = array<i32>} : memref<1x8x32xf32, #tpu.memory_space<vmem>>, vector<1x8x32xf32>,
    return
  }
  func.func @transform_0(%arg0: i32) -> (i32, i32, i32) {
    %c0_i32 = arith.constant 0 : i32
    %c0_i32_0 = arith.constant 0 : i32
    %c0_i32_1 = arith.constant 0 : i32
    return %arg0, %c0_i32, %c0_i32_0 : i32, i32, i32
  }
  func.func @transform_1(%arg0: i32) -> (i32, i32) {
    %c0_i32 = arith.constant 0 : i32
    %c0_i32_0 = arith.constant 0 : i32
    %c0_i32_1 = arith.constant 0 : i32
    return %c0_i32, %c0_i32_0 : i32, i32
  }
  func.func @transform_2(%arg0: i32) -> (i32, i32) {
    %c0_i32 = arith.constant 0 : i32
    %c0_i32_0 = arith.constant 0 : i32
    %c0_i32_1 = arith.constant 0 : i32
    return %c0_i32, %c0_i32_0 : i32, i32
  }
  func.func @transform_3(%arg0: i32) -> (i32, i32) {
    %c0_i32 = arith.constant 0 : i32
    %c0_i32_0 = arith.constant 0 : i32
    %c0_i32_1 = arith.constant 0 : i32
    return %c0_i32, %c0_i32_0 : i32, i32
  }
  func.func @transform_4(%arg0: i32) -> (i32, i32) {
    %c0_i32 = arith.constant 0 : i32
    %c0_i32_0 = arith.constant 0 : i32
    %c0_i32_1 = arith.constant 0 : i32
    return %c0_i32, %c0_i32_0 : i32, i32
  }
  func.func @transform_5(%arg0: i32) -> (i32, i32) {
    %c0_i32 = arith.constant 0 : i32
    %c0_i32_0 = arith.constant 0 : i32
    %c0_i32_1 = arith.constant 0 : i32
    return %c0_i32, %c0_i32_0 : i32, i32
  }
  func.func @transform_6(%arg0: i32) -> (i32, i32) {
    %c0_i32 = arith.constant 0 : i32
    %c0_i32_0 = arith.constant 0 : i32
    %c0_i32_1 = arith.constant 0 : i32
    return %c0_i32, %c0_i32_0 : i32, i32
  }
  func.func @transform_7(%arg0: i32) -> (i32, i32) {
    %c0_i32 = arith.constant 0 : i32
    %c0_i32_0 = arith.constant 0 : i32
    %c0_i32_1 = arith.constant 0 : i32
    return %c0_i32, %c0_i32_0 : i32, i32
  }
  func.func @transform_8(%arg0: i32) -> (i32, i32) {
    %c0_i32 = arith.constant 0 : i32
    %c0_i32_0 = arith.constant 0 : i32
    %c0_i32_1 = arith.constant 0 : i32
    return %c0_i32, %c0_i32_0 : i32, i32
  }
  func.func @transform_9(%arg0: i32) -> (i32, i32, i32) {
    %c0_i32 = arith.constant 0 : i32
    %c0_i32_0 = arith.constant 0 : i32
    %c0_i32_1 = arith.constant 0 : i32
    return %arg0, %c0_i32, %c0_i32_0 : i32, i32, i32
  }
}

</mosaic_0001>

<llo_original>
// kernel: tpu_custom_call.1
$region0: #{tpu_custom_call.1}
  #allocation0 [shape = 'u32[]', space=smem, size = 0x4, offset = 0x4, fixed_abs, tag = 'smem constant byte address 0x4 - core index']
  #allocation1 [shape = 'u32[144,128]{1,0:T(1,128)}', space=vmem, size = 0x12000, scoped, tag = 'internal scratch']
  %s0 = inlined_call_operand.hbm [shape: f32[2,8,32], index: 0, kind: input, shape index: {}]
  %s1 = inlined_call_operand.vmem [shape: f32[1,32], index: 1, kind: input, shape index: {}]
  %s2 = inlined_call_operand.vmem [shape: f32[1,32], index: 2, kind: input, shape index: {}]
  %s3 = inlined_call_operand.hbm [shape: bf16[32,96], index: 3, kind: input, shape index: {}]
  %s4 = inlined_call_operand.hbm [shape: f32[1,96], index: 4, kind: input, shape index: {}]
  %s5 = inlined_call_operand.vmem [shape: bf16[32,32], index: 5, kind: input, shape index: {}]
  %s6 = inlined_call_operand.vmem [shape: f32[1,32], index: 6, kind: input, shape index: {}]
  %s7 = inlined_call_operand.vmem [shape: f32[1,32], index: 7, kind: input, shape index: {}]
  %s8 = inlined_call_operand.vmem [shape: f32[1,32], index: 8, kind: input, shape index: {}]
  %s9 = inlined_call_operand.hbm [shape: f32[2,8,32], index: 9, kind: output, shape index: {}]
  %s10 = sld [smem:[#allocation0]]
  $region81: #{tpu_custom_call.1} parent=0
    _
  %s12 = ssub.s32 1, %s10
  %s13 = scalar_select 0, %s12, %s10
  $region1: #{tpu_custom_call.1} parent=0
    #allocation2 [shape = 'u8[8192]{0}', space=vmem, size = 0x2000, scoped, tag = 'input window, operand 0']
    #allocation3 [shape = 's32[2]{0}', space=sflag, size = 0x8, scoped, tag = 'scoped memory for tpu_custom_call.1']
    #allocation4 [shape = 's32[2]{0}', space=sflag, size = 0x8, scoped, tag = 'scoped memory for tpu_custom_call.1']
    #allocation5 [shape = 'u8[8192]{0}', space=vmem, size = 0x2000, scoped, tag = 'input window, operand 3, single buffered']
    #allocation6 [shape = 's32[1]{0}', space=sflag, size = 0x4, scoped, tag = 'scoped memory for tpu_custom_call.1']
    #allocation7 [shape = 'u8[512]{0}', space=vmem, size = 0x400, scoped, tag = 'input window, operand 4, single buffered']
    #allocation8 [shape = 'u8[8192]{0}', space=vmem, size = 0x2000, scoped, tag = 'output window, operand 0']
    %14 = vsyncpa [#allocation3], 0
    %s15 = scalar_lea.sflag [#allocation3], 1
    %16 = vsyncpa %s15, 0
    %17 = vsyncpa [#allocation6], 0
    %18 = vsyncpa [#allocation4], 0
    %s19 = scalar_lea.sflag [#allocation4], 1
    %20 = vsyncpa %s19, 0
    loop: start=0, step=1, limit=4
    $region2: #{tpu_custom_call.1} parent=1 // loop_pre_header
      _
    $region3: #{tpu_custom_call.1} parent=1 // loop_header
      %s22 = sphi 0, %s26
      %p23 = scmp.ge.s32.totalorder %s22, 4
      %s32 = sphi 0, %s34
      %s35 = sphi 0, %s32
      %s36 = sphi 0, %s35
      %s52 = sphi 0, %s36
      %s56 = sphi 0, %s56
      %s58 = sphi 0, %s56
      %s59 = sphi 0, %s58
      %s73 = sphi 0, %s59
      %s77 = sphi 0, %s77
      %s79 = sphi 0, %s77
      %s80 = sphi 0, %s79
      %s94 = sphi 0, %s80
      %s98 = sphi 0, %s98
      %s100 = sphi 0, %s98
      %s101 = sphi 0, %s100
      %s115 = sphi 0, %s101
      %s119 = sphi 0, %s119
      %s121 = sphi 0, %s119
      %s122 = sphi 0, %s121
      %s136 = sphi 0, %s122
      %s140 = sphi 0, %s140
      %s142 = sphi 0, %s140
      %s143 = sphi 0, %s142
      %s157 = sphi 0, %s143
      %s161 = sphi 0, %s161
      %s163 = sphi 0, %s161
      %s164 = sphi 0, %s163
      %s178 = sphi 0, %s164
      %s182 = sphi 0, %s182
      %s184 = sphi 0, %s182
      %s185 = sphi 0, %s184
      %s199 = sphi 0, %s185
      %s203 = sphi 0, %s203
      %s205 = sphi 0, %s203
      %s206 = sphi 0, %s205
      %s220 = sphi 0, %s206
      %s226 = sphi 0, %s228
      %s229 = sphi 0, %s226
      %s230 = sphi 0, %s229
      %s246 = sphi 0, %s230
    $region4: #{tpu_custom_call.1} parent=1 // loop_header_branch
      %25 = sbr.rel (%p23) target = $region8
    $region5: #{tpu_custom_call.1} parent=1 // loop_body
      %s27 = ssub.s32 %s22, 1
      %s28 = ssub.s32 %s22, 2
      %s29 = sadd.s32 %s22, 1
      %s30 = ssub.s32 %s22, %s29
      %p31 = scmp.eq.s32.totalorder %s30, 0
      %s33 = sadd.s32 %s32, 1
      %s34 = scalar_select %p31, %s32, %s33
      %p37 = pneg %p31
      %p38 = scmp.eq.s32.totalorder %s22, 1
      %p39 = por %p37, %p38
      %p40 = scmp.ne.s32.totalorder %s32, %s35
      %p41 = scmp.eq.s32.totalorder %s22, 0
      %p42 = por %p40, %p41
      %p43 = scmp.ne.s32.totalorder %s32, %s35
      %p44 = scmp.eq.s32.totalorder %s27, 1
      %p45 = por %p43, %p44
      %p46 = scmp.ne.s32.totalorder %s35, %s36
      %p47 = scmp.eq.s32.totalorder %s27, 0
      %p48 = por %p46, %p47
      %p49 = scmp.ne.s32.totalorder %s35, %s36
      %p50 = scmp.eq.s32.totalorder %s28, 1
      %p51 = por %p49, %p50
      %p53 = scmp.ne.s32.totalorder %s36, %s52
      %p54 = scmp.eq.s32.totalorder %s28, 0
      %p55 = por %p53, %p54
      %s57 = sadd.s32 %s56, 1
      %p60 = scmp.eq.s32.totalorder %s22, 1
      %p61 = scmp.ne.s32.totalorder %s56, %s58
      %p62 = scmp.eq.s32.totalorder %s22, 0
      %p63 = por %p61, %p62
      %p64 = scmp.ne.s32.totalorder %s56, %s58
      %p65 = scmp.eq.s32.totalorder %s27, 1
      %p66 = por %p64, %p65
      %p67 = scmp.ne.s32.totalorder %s58, %s59
      %p68 = scmp.eq.s32.totalorder %s27, 0
      %p69 = por %p67, %p68
      %p70 = scmp.ne.s32.totalorder %s58, %s59
      %p71 = scmp.eq.s32.totalorder %s28, 1
      %p72 = por %p70, %p71
      %p74 = scmp.ne.s32.totalorder %s59, %s73
      %p75 = scmp.eq.s32.totalorder %s28, 0
      %p76 = por %p74, %p75
      %s78 = sadd.s32 %s77, 1
      %p81 = scmp.eq.s32.totalorder %s22, 1
      %p82 = scmp.ne.s32.totalorder %s77, %s79
      %p83 = scmp.eq.s32.totalorder %s22, 0
      %p84 = por %p82, %p83
      %p85 = scmp.ne.s32.totalorder %s77, %s79
      %p86 = scmp.eq.s32.totalorder %s27, 1
      %p87 = por %p85, %p86
      %p88 = scmp.ne.s32.totalorder %s79, %s80
      %p89 = scmp.eq.s32.totalorder %s27, 0
      %p90 = por %p88, %p89
      %p91 = scmp.ne.s32.totalorder %s79, %s80
      %p92 = scmp.eq.s32.totalorder %s28, 1
      %p93 = por %p91, %p92
      %p95 = scmp.ne.s32.totalorder %s80, %s94
      %p96 = scmp.eq.s32.totalorder %s28, 0
      %p97 = por %p95, %p96
      %s99 = sadd.s32 %s98, 1
      %p102 = scmp.eq.s32.totalorder %s22, 1
      %p103 = scmp.ne.s32.totalorder %s98, %s100
      %p104 = scmp.eq.s32.totalorder %s22, 0
      %p105 = por %p103, %p104
      %p106 = scmp.ne.s32.totalorder %s98, %s100
      %p107 = scmp.eq.s32.totalorder %s27, 1
      %p108 = por %p106, %p107
      %p109 = scmp.ne.s32.totalorder %s100, %s101
      %p110 = scmp.eq.s32.totalorder %s27, 0
      %p111 = por %p109, %p110
      %p112 = scmp.ne.s32.totalorder %s100, %s101
      %p113 = scmp.eq.s32.totalorder %s28, 1
      %p114 = por %p112, %p113
      %p116 = scmp.ne.s32.totalorder %s101, %s115
      %p117 = scmp.eq.s32.totalorder %s28, 0
      %p118 = por %p116, %p117
      %s120 = sadd.s32 %s119, 1
      %p123 = scmp.eq.s32.totalorder %s22, 1
      %p124 = scmp.ne.s32.totalorder %s119, %s121
      %p125 = scmp.eq.s32.totalorder %s22, 0
      %p126 = por %p124, %p125
      %p127 = scmp.ne.s32.totalorder %s119, %s121
      %p128 = scmp.eq.s32.totalorder %s27, 1
      %p129 = por %p127, %p128
      %p130 = scmp.ne.s32.totalorder %s121, %s122
      %p131 = scmp.eq.s32.totalorder %s27, 0
      %p132 = por %p130, %p131
      %p133 = scmp.ne.s32.totalorder %s121, %s122
      %p134 = scmp.eq.s32.totalorder %s28, 1
      %p135 = por %p133, %p134
      %p137 = scmp.ne.s32.totalorder %s122, %s136
      %p138 = scmp.eq.s32.totalorder %s28, 0
      %p139 = por %p137, %p138
      %s141 = sadd.s32 %s140, 1
      %p144 = scmp.eq.s32.totalorder %s22, 1
      %p145 = scmp.ne.s32.totalorder %s140, %s142
      %p146 = scmp.eq.s32.totalorder %s22, 0
      %p147 = por %p145, %p146
      %p148 = scmp.ne.s32.totalorder %s140, %s142
      %p149 = scmp.eq.s32.totalorder %s27, 1
      %p150 = por %p148, %p149
      %p151 = scmp.ne.s32.totalorder %s142, %s143
      %p152 = scmp.eq.s32.totalorder %s27, 0
      %p153 = por %p151, %p152
      %p154 = scmp.ne.s32.totalorder %s142, %s143
      %p155 = scmp.eq.s32.totalorder %s28, 1
      %p156 = por %p154, %p155
      %p158 = scmp.ne.s32.totalorder %s143, %s157
      %p159 = scmp.eq.s32.totalorder %s28, 0
      %p160 = por %p158, %p159
      %s162 = sadd.s32 %s161, 1
      %p165 = scmp.eq.s32.totalorder %s22, 1
      %p166 = scmp.ne.s32.totalorder %s161, %s163
      %p167 = scmp.eq.s32.totalorder %s22, 0
      %p168 = por %p166, %p167
      %p169 = scmp.ne.s32.totalorder %s161, %s163
      %p170 = scmp.eq.s32.totalorder %s27, 1
      %p171 = por %p169, %p170
      %p172 = scmp.ne.s32.totalorder %s163, %s164
      %p173 = scmp.eq.s32.totalorder %s27, 0
      %p174 = por %p172, %p173
      %p175 = scmp.ne.s32.totalorder %s163, %s164
      %p176 = scmp.eq.s32.totalorder %s28, 1
      %p177 = por %p175, %p176
      %p179 = scmp.ne.s32.totalorder %s164, %s178
      %p180 = scmp.eq.s32.totalorder %s28, 0
      %p181 = por %p179, %p180
      %s183 = sadd.s32 %s182, 1
      %p186 = scmp.eq.s32.totalorder %s22, 1
      %p187 = scmp.ne.s32.totalorder %s182, %s184
      %p188 = scmp.eq.s32.totalorder %s22, 0
      %p189 = por %p187, %p188
      %p190 = scmp.ne.s32.totalorder %s182, %s184
      %p191 = scmp.eq.s32.totalorder %s27, 1
      %p192 = por %p190, %p191
      %p193 = scmp.ne.s32.totalorder %s184, %s185
      %p194 = scmp.eq.s32.totalorder %s27, 0
      %p195 = por %p193, %p194
      %p196 = scmp.ne.s32.totalorder %s184, %s185
      %p197 = scmp.eq.s32.totalorder %s28, 1
      %p198 = por %p196, %p197
      %p200 = scmp.ne.s32.totalorder %s185, %s199
      %p201 = scmp.eq.s32.totalorder %s28, 0
      %p202 = por %p200, %p201
      %s204 = sadd.s32 %s203, 1
      %p207 = scmp.eq.s32.totalorder %s22, 1
      %p208 = scmp.ne.s32.totalorder %s203, %s205
      %p209 = scmp.eq.s32.totalorder %s22, 0
      %p210 = por %p208, %p209
      %p211 = scmp.ne.s32.totalorder %s203, %s205
      %p212 = scmp.eq.s32.totalorder %s27, 1
      %p213 = por %p211, %p212
      %p214 = scmp.ne.s32.totalorder %s205, %s206
      %p215 = scmp.eq.s32.totalorder %s27, 0
      %p216 = por %p214, %p215
      %p217 = scmp.ne.s32.totalorder %s205, %s206
      %p218 = scmp.eq.s32.totalorder %s28, 1
      %p219 = por %p217, %p218
      %p221 = scmp.ne.s32.totalorder %s206, %s220
      %p222 = scmp.eq.s32.totalorder %s28, 0
      %p223 = por %p221, %p222
      %s224 = ssub.s32 %s22, %s29
      %p225 = scmp.eq.s32.totalorder %s224, 0
      %s227 = sadd.s32 %s226, 1
      %s228 = scalar_select %p225, %s226, %s227
      %p231 = pneg %p225
      %p232 = scmp.eq.s32.totalorder %s22, 1
      %p233 = por %p231, %p232
      %p234 = scmp.ne.s32.totalorder %s226, %s229
      %p235 = scmp.eq.s32.totalorder %s22, 0
      %p236 = por %p234, %p235
      %p237 = scmp.ne.s32.totalorder %s226, %s229
      %p238 = scmp.eq.s32.totalorder %s27, 1
      %p239 = por %p237, %p238
      %p240 = scmp.ne.s32.totalorder %s229, %s230
      %p241 = scmp.eq.s32.totalorder %s27, 0
      %p242 = por %p240, %p241
      %p243 = scmp.ne.s32.totalorder %s229, %s230
      %p244 = scmp.eq.s32.totalorder %s28, 1
      %p245 = por %p243, %p244
      %p247 = scmp.ne.s32.totalorder %s230, %s246
      %p248 = scmp.eq.s32.totalorder %s28, 0
      %p249 = por %p247, %p248
      %p250 = scmp.le.s32.totalorder 1, %s22
      %p251 = scmp.lt.s32.totalorder %s22, 3
      %p252 = pnand %p250, %p251
      %p253 = pneg %p252
      // Predicated region
      $region9: #{tpu_custom_call.1} parent=5 // pred_check
        _
      $region10: #{tpu_custom_call.1} parent=5 // pred_check_branch
        %255 = sbr.rel (%p252) target = $region12
      $region11: #{tpu_custom_call.1} parent=5 // pred_region
        %s256 = ssub.s32 %s22, 1
        // Predicated region
        $region13: #{tpu_custom_call.1} parent=11 // pred_check
          %p257 = pneg %p69
        $region14: #{tpu_custom_call.1} parent=11 // pred_check_branch
          %259 = sbr.rel (%p257) target = $region16
        $region15: #{tpu_custom_call.1} parent=11 // pred_region
          _
        $region16: #{tpu_custom_call.1} parent=11 // pred_fallthru
          _
        // Predicated region
        $region17: #{tpu_custom_call.1} parent=11 // pred_check
          %p260 = pneg %p90
        $region18: #{tpu_custom_call.1} parent=11 // pred_check_branch
          %262 = sbr.rel (%p260) target = $region20
        $region19: #{tpu_custom_call.1} parent=11 // pred_region
          _
        $region20: #{tpu_custom_call.1} parent=11 // pred_fallthru
          _
        // Predicated region
        $region21: #{tpu_custom_call.1} parent=11 // pred_check
          %p263 = pneg %p111
        $region22: #{tpu_custom_call.1} parent=11 // pred_check_branch
          %265 = sbr.rel (%p263) target = $region24
        $region23: #{tpu_custom_call.1} parent=11 // pred_region
          %s267 = ssub.s32 256, 256
          %268 = vsyncadd [#allocation6], %s267
          %s269 = sshll.u32 [#allocation5], 4
          %s270 = int_to_ptr.vmem [resolvable:$true] %s269
          %275 = dma.hbm_to_vmem [thread:$0]  %s3, 256, %s270, [#allocation6], 64, 64, 4
        $region24: #{tpu_custom_call.1} parent=11 // pred_fallthru
          _
        // Predicated region
        $region25: #{tpu_custom_call.1} parent=11 // pred_check
          %p276 = pneg %p132
        $region26: #{tpu_custom_call.1} parent=11 // pred_check_branch
          %278 = sbr.rel (%p276) target = $region28
        $region27: #{tpu_custom_call.1} parent=11 // pred_region
          %s280 = ssub.s32 16, 16
          %281 = vsyncadd [#allocation6], %s280
          %s283 = sshll.u32 [#allocation7], 4
          %s284 = int_to_ptr.vmem [resolvable:$true] %s283
          %286 = dma.hbm_to_vmem [thread:$0]  %s4, 16, %s284, [#allocation6]
        $region28: #{tpu_custom_call.1} parent=11 // pred_fallthru
          _
        // Predicated region
        $region29: #{tpu_custom_call.1} parent=11 // pred_check
          %p287 = pneg %p153
        $region30: #{tpu_custom_call.1} parent=11 // pred_check_branch
          %289 = sbr.rel (%p287) target = $region32
        $region31: #{tpu_custom_call.1} parent=11 // pred_region
          _
        $region32: #{tpu_custom_call.1} parent=11 // pred_fallthru
          _
        // Predicated region
        $region33: #{tpu_custom_call.1} parent=11 // pred_check
          %p290 = pneg %p174
        $region34: #{tpu_custom_call.1} parent=11 // pred_check_branch
          %292 = sbr.rel (%p290) target = $region36
        $region35: #{tpu_custom_call.1} parent=11 // pred_region
          _
        $region36: #{tpu_custom_call.1} parent=11 // pred_fallthru
          _
        // Predicated region
        $region37: #{tpu_custom_call.1} parent=11 // pred_check
          %p293 = pneg %p195
        $region38: #{tpu_custom_call.1} parent=11 // pred_check_branch
          %295 = sbr.rel (%p293) target = $region40
        $region39: #{tpu_custom_call.1} parent=11 // pred_region
          _
        $region40: #{tpu_custom_call.1} parent=11 // pred_fallthru
          _
        // Predicated region
        $region41: #{tpu_custom_call.1} parent=11 // pred_check
          %p296 = pneg %p216
        $region42: #{tpu_custom_call.1} parent=11 // pred_check_branch
          %298 = sbr.rel (%p296) target = $region44
        $region43: #{tpu_custom_call.1} parent=11 // pred_region
          _
        $region44: #{tpu_custom_call.1} parent=11 // pred_fallthru
          _
      $region12: #{tpu_custom_call.1} parent=5 // pred_fallthru
        _
      %p299 = scmp.lt.s32.totalorder %s22, 2
      // Predicated region
      $region45: #{tpu_custom_call.1} parent=5 // pred_check
        %p300 = pneg %p299
      $region46: #{tpu_custom_call.1} parent=5 // pred_check_branch
        %302 = sbr.rel (%p300) target = $region48
      $region47: #{tpu_custom_call.1} parent=5 // pred_region
        // Predicated region
        $region49: #{tpu_custom_call.1} parent=47 // pred_check
          %p303 = pneg %p42
        $region50: #{tpu_custom_call.1} parent=47 // pred_check_branch
          %305 = sbr.rel (%p303) target = $region52
        $region51: #{tpu_custom_call.1} parent=47 // pred_region
          %s306 = sand.u32 %s32, 1
          %s307 = scalar_lea.sflag [#allocation3], %s306
          %s308 = sand.u32 %s32, 1
          %s309 = smul.addr %s308, 8
          %s310 = scalar_lea.vmem [#allocation2], %s309
          %s312 = ssub.s32 128, 128
          %313 = vsyncadd %s307, %s312
          %s314 = smul.addr %s22, 128
          %s315 = scalar_lea.hbm %s0, %s314
          %s317 = sshll.u32 %s310, 4
          %s318 = int_to_ptr.vmem [resolvable:$true] %s317
          %320 = dma.hbm_to_vmem [thread:$0]  %s315, 128, %s318, %s307
        $region52: #{tpu_custom_call.1} parent=47 // pred_fallthru
          _
      $region48: #{tpu_custom_call.1} parent=5 // pred_fallthru
        _
      %p321 = scmp.le.s32.totalorder 1, %s22
      %p322 = scmp.lt.s32.totalorder %s22, 3
      %p323 = pnand %p321, %p322
      %p324 = pneg %p323
      // Predicated region
      $region53: #{tpu_custom_call.1} parent=5 // pred_check
        _
      $region54: #{tpu_custom_call.1} parent=5 // pred_check_branch
        %326 = sbr.rel (%p323) target = $region56
      $region55: #{tpu_custom_call.1} parent=5 // pred_region
        %s327 = ssub.s32 %s22, 1
        %s328 = sand.u32 %s35, 1
        %s329 = scalar_lea.sflag [#allocation3], %s328
        %s330 = sand.u32 %s35, 1
        %s331 = smul.addr %s330, 8
        %s332 = scalar_lea.vmem [#allocation2], %s331
        // Predicated region
        $region57: #{tpu_custom_call.1} parent=55 // pred_check
          %p333 = pneg %p48
        $region58: #{tpu_custom_call.1} parent=55 // pred_check_branch
          %335 = sbr.rel (%p333) target = $region60
        $region59: #{tpu_custom_call.1} parent=55 // pred_region
          %336 = dma.done %s329, 128
        $region60: #{tpu_custom_call.1} parent=55 // pred_fallthru
          _
        // Predicated region
        $region61: #{tpu_custom_call.1} parent=55 // pred_check
          %p337 = pneg %p111
        $region62: #{tpu_custom_call.1} parent=55 // pred_check_branch
          %339 = sbr.rel (%p337) target = $region64
        $region63: #{tpu_custom_call.1} parent=55 // pred_region
          %340 = dma.done [#allocation6], 256
        $region64: #{tpu_custom_call.1} parent=55 // pred_fallthru
          _
        // Predicated region
        $region65: #{tpu_custom_call.1} parent=55 // pred_check
          %p341 = pneg %p132
        $region66: #{tpu_custom_call.1} parent=55 // pred_check_branch
          %343 = sbr.rel (%p341) target = $region68
        $region67: #{tpu_custom_call.1} parent=55 // pred_region
          %344 = dma.done [#allocation6], 16
        $region68: #{tpu_custom_call.1} parent=55 // pred_fallthru
          _
        %s345 = sand.u32 %s35, 1
        %s346 = scalar_lea.sflag [#allocation3], %s345
        %s347 = sand.u32 %s35, 1
        %s348 = smul.addr %s347, 8
        %s349 = scalar_lea.vmem [#allocation2], %s348
        %p350 = pneg %p48
        %p351 = pneg %p45
        %p352 = pneg %p69
        %p353 = pneg %p66
        %p354 = pneg %p90
        %p355 = pneg %p87
        %p356 = pneg %p111
        %p357 = pneg %p108
        %p358 = pneg %p132
        %p359 = pneg %p129
        %p360 = pneg %p153
        %p361 = pneg %p150
        %p362 = pneg %p174
        %p363 = pneg %p171
        %p364 = pneg %p195
        %p365 = pneg %p192
        %p366 = pneg %p216
        %p367 = pneg %p213
        %p368 = pneg %p242
        %p369 = pneg %p239
        %s370 = sand.u32 %s229, 1
        %s371 = scalar_lea.sflag [#allocation4], %s370
        %s372 = sand.u32 %s229, 1
        %s373 = smul.addr %s372, 8
        %s374 = scalar_lea.vmem [#allocation8], %s373
        %v376 = vld [vmem:[%s332] sm:$0xff]
        %vm377 = vcmask 261120
        %v378 = vsel %vm377, %v376, 0.0
        %379 = vadd.xlane.f32.xlu0 %v378
        %v380 = vpop.xlane.xlu0 %379
        %v381 = vrcp.pop 32.0
        %v382 = vmul.f32 %v380, %v381
        %v383 = vsub.f32 %v376, %v382
        %v384 = vmul.f32 %v383, %v383
        %v385 = vsel %vm377, %v384, 0.0
        %386 = vadd.xlane.f32.xlu0 %v385
        %v387 = vpop.xlane.xlu0 %386
        %v388 = vmul.f32 %v387, %v381
        %v389 = vadd.f32 %v388, 1e-05
        %v390 = vrsqrt.pop %v389
        %v391 = vmul.f32 %v383, %v390
        %v392 = vld [vmem:[%s1] sm:$0x1]
        %v394 = vlaneseq
        %v395 = vshrl.u32 %v394, 7
        %v396 = vsub.s32 0, %v395
        %v397 = vrot.slane %v392, %v396
        %v399 = vmul.f32 %v391, %v397
        %v400 = vld [vmem:[%s2] sm:$0x1]
        %v402 = vlaneseq
        %v403 = vshrl.u32 %v402, 7
        %v404 = vsub.s32 0, %v403
        %v405 = vrot.slane %v400, %v404
        %v407 = vadd.f32 %v399, %v405
        %v408 = vpack.c.bf16 %v407, %v407
        %v409 = vld [vmem:[#allocation5] sm:$0xf]
        %v410 = vld [vmem:[#allocation5 + $0x4] sm:$0xf]
        %v411 = vld [vmem:[#allocation5 + $0x8] sm:$0xf]
        %v412 = vld [vmem:[#allocation5 + $0xc] sm:$0xf]
        %v413 = vld [vmem:[#allocation7] sm:$0x1]
        %v415 = vlaneseq
        %v416 = vshrl.u32 %v415, 7
        %v417 = vsub.s32 0, %v416
        %v418 = vrot.slane %v413, %v417
        %v424 = vunpack.c.l.b16 %v409
        %v425 = vunpack.c.l.b16 %v410
        %v426 = vunpack.c.l.b16 %v411
        %v427 = vunpack.c.l.b16 %v412
        %v428 = vpack.c.b16 %v425, %v424
        %v429 = vpack.c.b16 %v427, %v426
        %v433 = vsel %vm377, %v408, 0
        %435 = vmatprep.subr.bf16.mxu0 0
        %436 = vmatpush1.bf16.msra.mxu0 %v428
        %437 = vmatprep.subr.bf16.mxu0 0
        %438 = vmatpush1.bf16.msra.mxu0 %v429
        %439 = vmatprep.subr.bf16.mxu0 0
        %440 = vmatpush1.bf16.msra.mxu0 0
        %441 = vmatprep.subr.bf16.mxu0 0
        %442 = vmatpush1.bf16.msra.mxu0 0
        %443 = vmatprep.subr.bf16.mxu0 0
        %444 = vmatpush1.bf16.msra.mxu0 0
        %445 = vmatprep.subr.bf16.mxu0 0
        %446 = vmatpush1.bf16.msra.mxu0 0
        %447 = vmatprep.subr.bf16.mxu0 0
        %448 = vmatpush1.bf16.msra.mxu0 0
        %449 = vmatprep.subr.bf16.mxu0 0
        %450 = vmatpush1.bf16.msra.mxu0 0
        %451 = vmatprep.subr.bf16.mxu0 0
        %452 = vmatpush1.bf16.msra.mxu0 0
        %453 = vmatprep.subr.bf16.mxu0 0
        %454 = vmatpush1.bf16.msra.mxu0 0
        %455 = vmatprep.subr.bf16.mxu0 0
        %456 = vmatpush1.bf16.msra.mxu0 0
        %457 = vmatprep.subr.bf16.mxu0 0
        %458 = vmatpush1.bf16.msra.mxu0 0
        %459 = vmatprep.subr.bf16.mxu0 0
        %460 = vmatpush1.bf16.msra.mxu0 0
        %461 = vmatprep.subr.bf16.mxu0 0
        %462 = vmatpush1.bf16.msra.mxu0 0
        %463 = vmatprep.subr.bf16.mxu0 0
        %464 = vmatpush1.bf16.msra.mxu0 0
        %465 = vmatprep.subr.bf16.mxu0 0
        %466 = vmatpush1.bf16.msra.mxu0 0
        %467 = vmatprep.mubr.bf16.mxu0 0
        %468 = vmatmul.mubr.bf16.gmra.mrb[0].mxu0 %v433
        %v469 = vpop.f32.mrb[0].mxu0
        %v470 = vadd.f32 %v418, %v469
        %v471 = vpop.f32.mrb[0].mxu0
        %v472 = vpop.f32.mrb[0].mxu0
        %v473 = vpop.f32.mrb[0].mxu0
        %474 = vdwg.mxu0
        %v475 = vpack.c.bf16 %v470, %v470
        %477 = vrot.lane.b32.xlu0 %v475, 96
        %v478 = vpop.permute.xlu0 %477
        %vm479 = vcmask 64512
        %v481 = vsel %vm479, %v475, 0
        %v484 = vsel %vm479, %v478, 0
        %486 = vmatprep.subr.bf16.mxu0 0
        %487 = vmatpush1.bf16.xpose.msra.mxu0 %v484
        %488 = vmatprep.subr.bf16.mxu0 0
        %489 = vmatpush1.bf16.xpose.msra.mxu0 0
        %490 = vmatprep.subr.bf16.mxu0 0
        %491 = vmatpush1.bf16.xpose.msra.mxu0 0
        %492 = vmatprep.subr.bf16.mxu0 0
        %493 = vmatpush1.bf16.xpose.msra.mxu0 0
        %494 = vmatprep.subr.bf16.mxu0 0
        %495 = vmatpush1.bf16.xpose.msra.mxu0 0
        %496 = vmatprep.subr.bf16.mxu0 0
        %497 = vmatpush1.bf16.xpose.msra.mxu0 0
        %498 = vmatprep.subr.bf16.mxu0 0
        %499 = vmatpush1.bf16.xpose.msra.mxu0 0
        %500 = vmatprep.subr.bf16.mxu0 0
        %501 = vmatpush1.bf16.xpose.msra.mxu0 0
        %502 = vmatprep.subr.bf16.mxu0 0
        %503 = vmatpush1.bf16.xpose.msra.mxu0 0
        %504 = vmatprep.subr.bf16.mxu0 0
        %505 = vmatpush1.bf16.xpose.msra.mxu0 0
        %506 = vmatprep.subr.bf16.mxu0 0
        %507 = vmatpush1.bf16.xpose.msra.mxu0 0
        %508 = vmatprep.subr.bf16.mxu0 0
        %509 = vmatpush1.bf16.xpose.msra.mxu0 0
        %510 = vmatprep.subr.bf16.mxu0 0
        %511 = vmatpush1.bf16.xpose.msra.mxu0 0
        %512 = vmatprep.subr.bf16.mxu0 0
        %513 = vmatpush1.bf16.xpose.msra.mxu0 0
        %514 = vmatprep.subr.bf16.mxu0 0
        %515 = vmatpush1.bf16.xpose.msra.mxu0 0
        %516 = vmatprep.subr.bf16.mxu0 0
        %517 = vmatpush1.bf16.xpose.msra.mxu0 0
        %518 = vmatprep.mubr.bf16.mxu0 0
        %519 = vmatmul.mubr.bf16.gmra.mrb[0].mxu0 %v481
        %v520 = vpop.f32.mrb[0].mxu0
        %v521 = vadd.f32 0.0, %v520
        %v522 = vpop.f32.mrb[0].mxu0
        %v523 = vpop.f32.mrb[0].mxu0
        %v524 = vpop.f32.mrb[0].mxu0
        %525 = vdwg.mxu0
        %v526 = vmul.f32 %v521, 0.35355338
        %v527 = vsel %vm479, %v526, -inf
        %528 = vmax.xlane.f32.xlu0 %v527
        %v529 = vpop.xlane.xlu0 %528
        %v530 = vsub.f32 %v526, %v529
        %v531 = vmul.f32 %v530, 1.442695
        %v532 = vpow.pop %v531
        %v533 = vsel %vm479, %v532, 0.0
        %534 = vadd.xlane.f32.xlu0 %v533
        %v535 = vpop.xlane.xlu0 %534
        %v536 = vrcp.pop %v535
        %v537 = vmul.f32 %v532, %v536
        %v538 = vpack.c.bf16 %v537, %v537
        %539 = vrot.lane.b32.xlu0 %v475, 64
        %v540 = vpop.permute.xlu0 %539
        %v542 = vsel %vm479, %v538, 0
        %vm544 = vcmask 1043456
        %v546 = vsel %vm544, %v540, 0
        %548 = vmatprep.subr.bf16.mxu0 0
        %549 = vmatpush1.bf16.msra.mxu0 %v546
        %550 = vmatprep.subr.bf16.mxu0 0
        %551 = vmatpush1.bf16.msra.mxu0 0
        %552 = vmatprep.subr.bf16.mxu0 0
        %553 = vmatpush1.bf16.msra.mxu0 0
        %554 = vmatprep.subr.bf16.mxu0 0
        %555 = vmatpush1.bf16.msra.mxu0 0
        %556 = vmatprep.subr.bf16.mxu0 0
        %557 = vmatpush1.bf16.msra.mxu0 0
        %558 = vmatprep.subr.bf16.mxu0 0
        %559 = vmatpush1.bf16.msra.mxu0 0
        %560 = vmatprep.subr.bf16.mxu0 0
        %561 = vmatpush1.bf16.msra.mxu0 0
        %562 = vmatprep.subr.bf16.mxu0 0
        %563 = vmatpush1.bf16.msra.mxu0 0
        %564 = vmatprep.subr.bf16.mxu0 0
        %565 = vmatpush1.bf16.msra.mxu0 0
        %566 = vmatprep.subr.bf16.mxu0 0
        %567 = vmatpush1.bf16.msra.mxu0 0
        %568 = vmatprep.subr.bf16.mxu0 0
        %569 = vmatpush1.bf16.msra.mxu0 0
        %570 = vmatprep.subr.bf16.mxu0 0
        %571 = vmatpush1.bf16.msra.mxu0 0
        %572 = vmatprep.subr.bf16.mxu0 0
        %573 = vmatpush1.bf16.msra.mxu0 0
        %574 = vmatprep.subr.bf16.mxu0 0
        %575 = vmatpush1.bf16.msra.mxu0 0
        %576 = vmatprep.subr.bf16.mxu0 0
        %577 = vmatpush1.bf16.msra.mxu0 0
        %578 = vmatprep.subr.bf16.mxu0 0
        %579 = vmatpush1.bf16.msra.mxu0 0
        %580 = vmatprep.mubr.bf16.mxu0 0
        %581 = vmatmul.mubr.bf16.gmra.mrb[0].mxu0 %v542
        %v582 = vpop.f32.mrb[0].mxu0
        %v583 = vadd.f32 0.0, %v582
        %v584 = vpop.f32.mrb[0].mxu0
        %v585 = vpop.f32.mrb[0].mxu0
        %v586 = vpop.f32.mrb[0].mxu0
        %587 = vdwg.mxu0
        %v588 = vpack.c.bf16 %v583, %v583
        %v589 = vld [vmem:[%s5] sm:$0xf]
        %590 = vrot.lane.b32.xlu0 %v475, 120
        %v591 = vpop.permute.xlu0 %590
        %592 = vrot.lane.b32.xlu0 %v475, 88
        %v593 = vpop.permute.xlu0 %592
        %v595 = vsel %vm479, %v591, 0
        %v598 = vsel %vm479, %v593, 0
        %600 = vmatprep.subr.bf16.mxu0 0
        %601 = vmatpush1.bf16.xpose.msra.mxu0 %v598
        %602 = vmatprep.subr.bf16.mxu0 0
        %603 = vmatpush1.bf16.xpose.msra.mxu0 0
        %604 = vmatprep.subr.bf16.mxu0 0
        %605 = vmatpush1.bf16.xpose.msra.mxu0 0
        %606 = vmatprep.subr.bf16.mxu0 0
        %607 = vmatpush1.bf16.xpose.msra.mxu0 0
        %608 = vmatprep.subr.bf16.mxu0 0
        %609 = vmatpush1.bf16.xpose.msra.mxu0 0
        %610 = vmatprep.subr.bf16.mxu0 0
        %611 = vmatpush1.bf16.xpose.msra.mxu0 0
        %612 = vmatprep.subr.bf16.mxu0 0
        %613 = vmatpush1.bf16.xpose.msra.mxu0 0
        %614 = vmatprep.subr.bf16.mxu0 0
        %615 = vmatpush1.bf16.xpose.msra.mxu0 0
        %616 = vmatprep.subr.bf16.mxu0 0
        %617 = vmatpush1.bf16.xpose.msra.mxu0 0
        %618 = vmatprep.subr.bf16.mxu0 0
        %619 = vmatpush1.bf16.xpose.msra.mxu0 0
        %620 = vmatprep.subr.bf16.mxu0 0
        %621 = vmatpush1.bf16.xpose.msra.mxu0 0
        %622 = vmatprep.subr.bf16.mxu0 0
        %623 = vmatpush1.bf16.xpose.msra.mxu0 0
        %624 = vmatprep.subr.bf16.mxu0 0
        %625 = vmatpush1.bf16.xpose.msra.mxu0 0
        %626 = vmatprep.subr.bf16.mxu0 0
        %627 = vmatpush1.bf16.xpose.msra.mxu0 0
        %628 = vmatprep.subr.bf16.mxu0 0
        %629 = vmatpush1.bf16.xpose.msra.mxu0 0
        %630 = vmatprep.subr.bf16.mxu0 0
        %631 = vmatpush1.bf16.xpose.msra.mxu0 0
        %632 = vmatprep.mubr.bf16.mxu0 0
        %633 = vmatmul.mubr.bf16.gmra.mrb[0].mxu0 %v595
        %v634 = vpop.f32.mrb[0].mxu0
        %v635 = vadd.f32 0.0, %v634
        %v636 = vpop.f32.mrb[0].mxu0
        %v637 = vpop.f32.mrb[0].mxu0
        %v638 = vpop.f32.mrb[0].mxu0
        %639 = vdwg.mxu0
        %v640 = vmul.f32 %v635, 0.35355338
        %v641 = vsel %vm479, %v640, -inf
        %642 = vmax.xlane.f32.xlu0 %v641
        %v643 = vpop.xlane.xlu0 %642
        %v644 = vsub.f32 %v640, %v643
        %v645 = vmul.f32 %v644, 1.442695
        %v646 = vpow.pop %v645
        %v647 = vsel %vm479, %v646, 0.0
        %648 = vadd.xlane.f32.xlu0 %v647
        %v649 = vpop.xlane.xlu0 %648
        %v650 = vrcp.pop %v649
        %v651 = vmul.f32 %v646, %v650
        %v652 = vpack.c.bf16 %v651, %v651
        %653 = vrot.lane.b32.xlu0 %v475, 56
        %v654 = vpop.permute.xlu0 %653
        %v656 = vsel %vm479, %v652, 0
        %v659 = vsel %vm544, %v654, 0
        %661 = vmatprep.subr.bf16.mxu0 0
        %662 = vmatpush1.bf16.msra.mxu0 %v659
        %663 = vmatprep.subr.bf16.mxu0 0
        %664 = vmatpush1.bf16.msra.mxu0 0
        %665 = vmatprep.subr.bf16.mxu0 0
        %666 = vmatpush1.bf16.msra.mxu0 0
        %667 = vmatprep.subr.bf16.mxu0 0
        %668 = vmatpush1.bf16.msra.mxu0 0
        %669 = vmatprep.subr.bf16.mxu0 0
        %670 = vmatpush1.bf16.msra.mxu0 0
        %671 = vmatprep.subr.bf16.mxu0 0
        %672 = vmatpush1.bf16.msra.mxu0 0
        %673 = vmatprep.subr.bf16.mxu0 0
        %674 = vmatpush1.bf16.msra.mxu0 0
        %675 = vmatprep.subr.bf16.mxu0 0
        %676 = vmatpush1.bf16.msra.mxu0 0
        %677 = vmatprep.subr.bf16.mxu0 0
        %678 = vmatpush1.bf16.msra.mxu0 0
        %679 = vmatprep.subr.bf16.mxu0 0
        %680 = vmatpush1.bf16.msra.mxu0 0
        %681 = vmatprep.subr.bf16.mxu0 0
        %682 = vmatpush1.bf16.msra.mxu0 0
        %683 = vmatprep.subr.bf16.mxu0 0
        %684 = vmatpush1.bf16.msra.mxu0 0
        %685 = vmatprep.subr.bf16.mxu0 0
        %686 = vmatpush1.bf16.msra.mxu0 0
        %687 = vmatprep.subr.bf16.mxu0 0
        %688 = vmatpush1.bf16.msra.mxu0 0
        %689 = vmatprep.subr.bf16.mxu0 0
        %690 = vmatpush1.bf16.msra.mxu0 0
        %691 = vmatprep.subr.bf16.mxu0 0
        %692 = vmatpush1.bf16.msra.mxu0 0
        %693 = vmatprep.mubr.bf16.mxu0 0
        %694 = vmatmul.mubr.bf16.gmra.mrb[0].mxu0 %v656
        %v695 = vpop.f32.mrb[0].mxu0
        %v696 = vadd.f32 0.0, %v695
        %v697 = vpop.f32.mrb[0].mxu0
        %v698 = vpop.f32.mrb[0].mxu0
        %v699 = vpop.f32.mrb[0].mxu0
        %700 = vdwg.mxu0
        %v701 = vpack.c.bf16 %v696, %v696
        %v702 = vld [vmem:[%s5 + $0x4] sm:$0xf]
        %v704 = vsel %vm479, %v701, 0
        %v707 = vsel %vm544, %v702, 0
        %709 = vmatprep.subr.bf16.mxu0 0
        %710 = vmatpush1.bf16.msra.mxu0 %v707
        %711 = vmatprep.subr.bf16.mxu0 0
        %712 = vmatpush1.bf16.msra.mxu0 0
        %713 = vmatprep.subr.bf16.mxu0 0
        %714 = vmatpush1.bf16.msra.mxu0 0
        %715 = vmatprep.subr.bf16.mxu0 0
        %716 = vmatpush1.bf16.msra.mxu0 0
        %717 = vmatprep.subr.bf16.mxu0 0
        %718 = vmatpush1.bf16.msra.mxu0 0
        %719 = vmatprep.subr.bf16.mxu0 0
        %720 = vmatpush1.bf16.msra.mxu0 0
        %721 = vmatprep.subr.bf16.mxu0 0
        %722 = vmatpush1.bf16.msra.mxu0 0
        %723 = vmatprep.subr.bf16.mxu0 0
        %724 = vmatpush1.bf16.msra.mxu0 0
        %725 = vmatprep.subr.bf16.mxu0 0
        %726 = vmatpush1.bf16.msra.mxu0 0
        %727 = vmatprep.subr.bf16.mxu0 0
        %728 = vmatpush1.bf16.msra.mxu0 0
        %729 = vmatprep.subr.bf16.mxu0 0
        %730 = vmatpush1.bf16.msra.mxu0 0
        %731 = vmatprep.subr.bf16.mxu0 0
        %732 = vmatpush1.bf16.msra.mxu0 0
        %733 = vmatprep.subr.bf16.mxu0 0
        %734 = vmatpush1.bf16.msra.mxu0 0
        %735 = vmatprep.subr.bf16.mxu0 0
        %736 = vmatpush1.bf16.msra.mxu0 0
        %737 = vmatprep.subr.bf16.mxu0 0
        %738 = vmatpush1.bf16.msra.mxu0 0
        %739 = vmatprep.subr.bf16.mxu0 0
        %740 = vmatpush1.bf16.msra.mxu0 0
        %741 = vmatprep.mubr.bf16.mxu0 0
        %742 = vmatmul.mubr.bf16.gmra.mrb[0].mxu0 %v704
        %v743 = vpop.f32.mrb[0].mxu0
        %v744 = vadd.f32 0.0, %v743
        %v745 = vpop.f32.mrb[0].mxu0
        %v746 = vpop.f32.mrb[0].mxu0
        %v747 = vpop.f32.mrb[0].mxu0
        %748 = vdwg.mxu0
        %v750 = vsel %vm479, %v588, 0
        %v753 = vsel %vm544, %v589, 0
        %755 = vmatprep.subr.bf16.mxu0 0
        %756 = vmatpush1.bf16.msra.mxu0 %v753
        %757 = vmatprep.subr.bf16.mxu0 0
        %758 = vmatpush1.bf16.msra.mxu0 0
        %759 = vmatprep.subr.bf16.mxu0 0
        %760 = vmatpush1.bf16.msra.mxu0 0
        %761 = vmatprep.subr.bf16.mxu0 0
        %762 = vmatpush1.bf16.msra.mxu0 0
        %763 = vmatprep.subr.bf16.mxu0 0
        %764 = vmatpush1.bf16.msra.mxu0 0
        %765 = vmatprep.subr.bf16.mxu0 0
        %766 = vmatpush1.bf16.msra.mxu0 0
        %767 = vmatprep.subr.bf16.mxu0 0
        %768 = vmatpush1.bf16.msra.mxu0 0
        %769 = vmatprep.subr.bf16.mxu0 0
        %770 = vmatpush1.bf16.msra.mxu0 0
        %771 = vmatprep.subr.bf16.mxu0 0
        %772 = vmatpush1.bf16.msra.mxu0 0
        %773 = vmatprep.subr.bf16.mxu0 0
        %774 = vmatpush1.bf16.msra.mxu0 0
        %775 = vmatprep.subr.bf16.mxu0 0
        %776 = vmatpush1.bf16.msra.mxu0 0
        %777 = vmatprep.subr.bf16.mxu0 0
        %778 = vmatpush1.bf16.msra.mxu0 0
        %779 = vmatprep.subr.bf16.mxu0 0
        %780 = vmatpush1.bf16.msra.mxu0 0
        %781 = vmatprep.subr.bf16.mxu0 0
        %782 = vmatpush1.bf16.msra.mxu0 0
        %783 = vmatprep.subr.bf16.mxu0 0
        %784 = vmatpush1.bf16.msra.mxu0 0
        %785 = vmatprep.subr.bf16.mxu0 0
        %786 = vmatpush1.bf16.msra.mxu0 0
        %787 = vmatprep.mubr.bf16.mxu0 0
        %788 = vmatmul.mubr.bf16.gmra.mrb[0].mxu0 %v750
        %v789 = vpop.f32.mrb[0].mxu0
        %v790 = vadd.f32 %v744, %v789
        %v791 = vpop.f32.mrb[0].mxu0
        %v792 = vpop.f32.mrb[0].mxu0
        %v793 = vpop.f32.mrb[0].mxu0
        %794 = vdwg.mxu0
        %795 = vrot.lane.b32.xlu0 %v475, 112
        %v796 = vpop.permute.xlu0 %795
        %797 = vrot.lane.b32.xlu0 %v475, 80
        %v798 = vpop.permute.xlu0 %797
        %v800 = vsel %vm479, %v796, 0
        %v803 = vsel %vm479, %v798, 0
        %805 = vmatprep.subr.bf16.mxu0 0
        %806 = vmatpush1.bf16.xpose.msra.mxu0 %v803
        %807 = vmatprep.subr.bf16.mxu0 0
        %808 = vmatpush1.bf16.xpose.msra.mxu0 0
        %809 = vmatprep.subr.bf16.mxu0 0
        %810 = vmatpush1.bf16.xpose.msra.mxu0 0
        %811 = vmatprep.subr.bf16.mxu0 0
        %812 = vmatpush1.bf16.xpose.msra.mxu0 0
        %813 = vmatprep.subr.bf16.mxu0 0
        %814 = vmatpush1.bf16.xpose.msra.mxu0 0
        %815 = vmatprep.subr.bf16.mxu0 0
        %816 = vmatpush1.bf16.xpose.msra.mxu0 0
        %817 = vmatprep.subr.bf16.mxu0 0
        %818 = vmatpush1.bf16.xpose.msra.mxu0 0
        %819 = vmatprep.subr.bf16.mxu0 0
        %820 = vmatpush1.bf16.xpose.msra.mxu0 0
        %821 = vmatprep.subr.bf16.mxu0 0
        %822 = vmatpush1.bf16.xpose.msra.mxu0 0
        %823 = vmatprep.subr.bf16.mxu0 0
        %824 = vmatpush1.bf16.xpose.msra.mxu0 0
        %825 = vmatprep.subr.bf16.mxu0 0
        %826 = vmatpush1.bf16.xpose.msra.mxu0 0
        %827 = vmatprep.subr.bf16.mxu0 0
        %828 = vmatpush1.bf16.xpose.msra.mxu0 0
        %829 = vmatprep.subr.bf16.mxu0 0
        %830 = vmatpush1.bf16.xpose.msra.mxu0 0
        %831 = vmatprep.subr.bf16.mxu0 0
        %832 = vmatpush1.bf16.xpose.msra.mxu0 0
        %833 = vmatprep.subr.bf16.mxu0 0
        %834 = vmatpush1.bf16.xpose.msra.mxu0 0
        %835 = vmatprep.subr.bf16.mxu0 0
        %836 = vmatpush1.bf16.xpose.msra.mxu0 0
        %837 = vmatprep.mubr.bf16.mxu0 0
        %838 = vmatmul.mubr.bf16.gmra.mrb[0].mxu0 %v800
        %v839 = vpop.f32.mrb[0].mxu0
        %v840 = vadd.f32 0.0, %v839
        %v841 = vpop.f32.mrb[0].mxu0
        %v842 = vpop.f32.mrb[0].mxu0
        %v843 = vpop.f32.mrb[0].mxu0
        %844 = vdwg.mxu0
        %v845 = vmul.f32 %v840, 0.35355338
        %v846 = vsel %vm479, %v845, -inf
        %847 = vmax.xlane.f32.xlu0 %v846
        %v848 = vpop.xlane.xlu0 %847
        %v849 = vsub.f32 %v845, %v848
        %v850 = vmul.f32 %v849, 1.442695
        %v851 = vpow.pop %v850
        %v852 = vsel %vm479, %v851, 0.0
        %853 = vadd.xlane.f32.xlu0 %v852
        %v854 = vpop.xlane.xlu0 %853
        %v855 = vrcp.pop %v854
        %v856 = vmul.f32 %v851, %v855
        %v857 = vpack.c.bf16 %v856, %v856
        %858 = vrot.lane.b32.xlu0 %v475, 48
        %v859 = vpop.permute.xlu0 %858
        %v861 = vsel %vm479, %v857, 0
        %v864 = vsel %vm544, %v859, 0
        %866 = vmatprep.subr.bf16.mxu0 0
        %867 = vmatpush1.bf16.msra.mxu0 %v864
        %868 = vmatprep.subr.bf16.mxu0 0
        %869 = vmatpush1.bf16.msra.mxu0 0
        %870 = vmatprep.subr.bf16.mxu0 0
        %871 = vmatpush1.bf16.msra.mxu0 0
        %872 = vmatprep.subr.bf16.mxu0 0
        %873 = vmatpush1.bf16.msra.mxu0 0
        %874 = vmatprep.subr.bf16.mxu0 0
        %875 = vmatpush1.bf16.msra.mxu0 0
        %876 = vmatprep.subr.bf16.mxu0 0
        %877 = vmatpush1.bf16.msra.mxu0 0
        %878 = vmatprep.subr.bf16.mxu0 0
        %879 = vmatpush1.bf16.msra.mxu0 0
        %880 = vmatprep.subr.bf16.mxu0 0
        %881 = vmatpush1.bf16.msra.mxu0 0
        %882 = vmatprep.subr.bf16.mxu0 0
        %883 = vmatpush1.bf16.msra.mxu0 0
        %884 = vmatprep.subr.bf16.mxu0 0
        %885 = vmatpush1.bf16.msra.mxu0 0
        %886 = vmatprep.subr.bf16.mxu0 0
        %887 = vmatpush1.bf16.msra.mxu0 0
        %888 = vmatprep.subr.bf16.mxu0 0
        %889 = vmatpush1.bf16.msra.mxu0 0
        %890 = vmatprep.subr.bf16.mxu0 0
        %891 = vmatpush1.bf16.msra.mxu0 0
        %892 = vmatprep.subr.bf16.mxu0 0
        %893 = vmatpush1.bf16.msra.mxu0 0
        %894 = vmatprep.subr.bf16.mxu0 0
        %895 = vmatpush1.bf16.msra.mxu0 0
        %896 = vmatprep.subr.bf16.mxu0 0
        %897 = vmatpush1.bf16.msra.mxu0 0
        %898 = vmatprep.mubr.bf16.mxu0 0
        %899 = vmatmul.mubr.bf16.gmra.mrb[0].mxu0 %v861
        %v900 = vpop.f32.mrb[0].mxu0
        %v901 = vadd.f32 0.0, %v900
        %v902 = vpop.f32.mrb[0].mxu0
        %v903 = vpop.f32.mrb[0].mxu0
        %v904 = vpop.f32.mrb[0].mxu0
        %905 = vdwg.mxu0
        %v906 = vpack.c.bf16 %v901, %v901
        %v907 = vld [vmem:[%s5 + $0x8] sm:$0xf]
        %v909 = vsel %vm479, %v906, 0
        %v912 = vsel %vm544, %v907, 0
        %914 = vmatprep.subr.bf16.mxu0 0
        %915 = vmatpush1.bf16.msra.mxu0 %v912
        %916 = vmatprep.subr.bf16.mxu0 0
        %917 = vmatpush1.bf16.msra.mxu0 0
        %918 = vmatprep.subr.bf16.mxu0 0
        %919 = vmatpush1.bf16.msra.mxu0 0
        %920 = vmatprep.subr.bf16.mxu0 0
        %921 = vmatpush1.bf16.msra.mxu0 0
        %922 = vmatprep.subr.bf16.mxu0 0
        %923 = vmatpush1.bf16.msra.mxu0 0
        %924 = vmatprep.subr.bf16.mxu0 0
        %925 = vmatpush1.bf16.msra.mxu0 0
        %926 = vmatprep.subr.bf16.mxu0 0
        %927 = vmatpush1.bf16.msra.mxu0 0
        %928 = vmatprep.subr.bf16.mxu0 0
        %929 = vmatpush1.bf16.msra.mxu0 0
        %930 = vmatprep.subr.bf16.mxu0 0
        %931 = vmatpush1.bf16.msra.mxu0 0
        %932 = vmatprep.subr.bf16.mxu0 0
        %933 = vmatpush1.bf16.msra.mxu0 0
        %934 = vmatprep.subr.bf16.mxu0 0
        %935 = vmatpush1.bf16.msra.mxu0 0
        %936 = vmatprep.subr.bf16.mxu0 0
        %937 = vmatpush1.bf16.msra.mxu0 0
        %938 = vmatprep.subr.bf16.mxu0 0
        %939 = vmatpush1.bf16.msra.mxu0 0
        %940 = vmatprep.subr.bf16.mxu0 0
        %941 = vmatpush1.bf16.msra.mxu0 0
        %942 = vmatprep.subr.bf16.mxu0 0
        %943 = vmatpush1.bf16.msra.mxu0 0
        %944 = vmatprep.subr.bf16.mxu0 0
        %945 = vmatpush1.bf16.msra.mxu0 0
        %946 = vmatprep.mubr.bf16.mxu0 0
        %947 = vmatmul.mubr.bf16.gmra.mrb[0].mxu0 %v909
        %v948 = vpop.f32.mrb[0].mxu0
        %v949 = vadd.f32 0.0, %v948
        %v950 = vpop.f32.mrb[0].mxu0
        %v951 = vpop.f32.mrb[0].mxu0
        %v952 = vpop.f32.mrb[0].mxu0
        %953 = vdwg.mxu0
        %v954 = vadd.f32 %v790, %v949
        %955 = vrot.lane.b32.xlu0 %v475, 104
        %v956 = vpop.permute.xlu0 %955
        %957 = vrot.lane.b32.xlu0 %v475, 72
        %v958 = vpop.permute.xlu0 %957
        %v960 = vsel %vm479, %v956, 0
        %v963 = vsel %vm479, %v958, 0
        %965 = vmatprep.subr.bf16.mxu0 0
        %966 = vmatpush1.bf16.xpose.msra.mxu0 %v963
        %967 = vmatprep.subr.bf16.mxu0 0
        %968 = vmatpush1.bf16.xpose.msra.mxu0 0
        %969 = vmatprep.subr.bf16.mxu0 0
        %970 = vmatpush1.bf16.xpose.msra.mxu0 0
        %971 = vmatprep.subr.bf16.mxu0 0
        %972 = vmatpush1.bf16.xpose.msra.mxu0 0
        %973 = vmatprep.subr.bf16.mxu0 0
        %974 = vmatpush1.bf16.xpose.msra.mxu0 0
        %975 = vmatprep.subr.bf16.mxu0 0
        %976 = vmatpush1.bf16.xpose.msra.mxu0 0
        %977 = vmatprep.subr.bf16.mxu0 0
        %978 = vmatpush1.bf16.xpose.msra.mxu0 0
        %979 = vmatprep.subr.bf16.mxu0 0
        %980 = vmatpush1.bf16.xpose.msra.mxu0 0
        %981 = vmatprep.subr.bf16.mxu0 0
        %982 = vmatpush1.bf16.xpose.msra.mxu0 0
        %983 = vmatprep.subr.bf16.mxu0 0
        %984 = vmatpush1.bf16.xpose.msra.mxu0 0
        %985 = vmatprep.subr.bf16.mxu0 0
        %986 = vmatpush1.bf16.xpose.msra.mxu0 0
        %987 = vmatprep.subr.bf16.mxu0 0
        %988 = vmatpush1.bf16.xpose.msra.mxu0 0
        %989 = vmatprep.subr.bf16.mxu0 0
        %990 = vmatpush1.bf16.xpose.msra.mxu0 0
        %991 = vmatprep.subr.bf16.mxu0 0
        %992 = vmatpush1.bf16.xpose.msra.mxu0 0
        %993 = vmatprep.subr.bf16.mxu0 0
        %994 = vmatpush1.bf16.xpose.msra.mxu0 0
        %995 = vmatprep.subr.bf16.mxu0 0
        %996 = vmatpush1.bf16.xpose.msra.mxu0 0
        %997 = vmatprep.mubr.bf16.mxu0 0
        %998 = vmatmul.mubr.bf16.gmra.mrb[0].mxu0 %v960
        %v999 = vpop.f32.mrb[0].mxu0
        %v1000 = vadd.f32 0.0, %v999
        %v1001 = vpop.f32.mrb[0].mxu0
        %v1002 = vpop.f32.mrb[0].mxu0
        %v1003 = vpop.f32.mrb[0].mxu0
        %1004 = vdwg.mxu0
        %v1005 = vmul.f32 %v1000, 0.35355338
        %v1006 = vsel %vm479, %v1005, -inf
        %1007 = vmax.xlane.f32.xlu0 %v1006
        %v1008 = vpop.xlane.xlu0 %1007
        %v1009 = vsub.f32 %v1005, %v1008
        %v1010 = vmul.f32 %v1009, 1.442695
        %v1011 = vpow.pop %v1010
        %v1012 = vsel %vm479, %v1011, 0.0
        %1013 = vadd.xlane.f32.xlu0 %v1012
        %v1014 = vpop.xlane.xlu0 %1013
        %v1015 = vrcp.pop %v1014
        %v1016 = vmul.f32 %v1011, %v1015
        %v1017 = vpack.c.bf16 %v1016, %v1016
        %1018 = vrot.lane.b32.xlu0 %v475, 40
        %v1019 = vpop.permute.xlu0 %1018
        %v1021 = vsel %vm479, %v1017, 0
        %v1024 = vsel %vm544, %v1019, 0
        %1026 = vmatprep.subr.bf16.mxu0 0
        %1027 = vmatpush1.bf16.msra.mxu0 %v1024
        %1028 = vmatprep.subr.bf16.mxu0 0
        %1029 = vmatpush1.bf16.msra.mxu0 0
        %1030 = vmatprep.subr.bf16.mxu0 0
        %1031 = vmatpush1.bf16.msra.mxu0 0
        %1032 = vmatprep.subr.bf16.mxu0 0
        %1033 = vmatpush1.bf16.msra.mxu0 0
        %1034 = vmatprep.subr.bf16.mxu0 0
        %1035 = vmatpush1.bf16.msra.mxu0 0
        %1036 = vmatprep.subr.bf16.mxu0 0
        %1037 = vmatpush1.bf16.msra.mxu0 0
        %1038 = vmatprep.subr.bf16.mxu0 0
        %1039 = vmatpush1.bf16.msra.mxu0 0
        %1040 = vmatprep.subr.bf16.mxu0 0
        %1041 = vmatpush1.bf16.msra.mxu0 0
        %1042 = vmatprep.subr.bf16.mxu0 0
        %1043 = vmatpush1.bf16.msra.mxu0 0
        %1044 = vmatprep.subr.bf16.mxu0 0
        %1045 = vmatpush1.bf16.msra.mxu0 0
        %1046 = vmatprep.subr.bf16.mxu0 0
        %1047 = vmatpush1.bf16.msra.mxu0 0
        %1048 = vmatprep.subr.bf16.mxu0 0
        %1049 = vmatpush1.bf16.msra.mxu0 0
        %1050 = vmatprep.subr.bf16.mxu0 0
        %1051 = vmatpush1.bf16.msra.mxu0 0
        %1052 = vmatprep.subr.bf16.mxu0 0
        %1053 = vmatpush1.bf16.msra.mxu0 0
        %1054 = vmatprep.subr.bf16.mxu0 0
        %1055 = vmatpush1.bf16.msra.mxu0 0
        %1056 = vmatprep.subr.bf16.mxu0 0
        %1057 = vmatpush1.bf16.msra.mxu0 0
        %1058 = vmatprep.mubr.bf16.mxu0 0
        %1059 = vmatmul.mubr.bf16.gmra.mrb[0].mxu0 %v1021
        %v1060 = vpop.f32.mrb[0].mxu0
        %v1061 = vadd.f32 0.0, %v1060
        %v1062 = vpop.f32.mrb[0].mxu0
        %v1063 = vpop.f32.mrb[0].mxu0
        %v1064 = vpop.f32.mrb[0].mxu0
        %1065 = vdwg.mxu0
        %v1066 = vpack.c.bf16 %v1061, %v1061
        %v1067 = vld [vmem:[%s5 + $0xc] sm:$0xf]
        %v1069 = vsel %vm479, %v1066, 0
        %v1072 = vsel %vm544, %v1067, 0
        %1074 = vmatprep.subr.bf16.mxu0 0
        %1075 = vmatpush1.bf16.msra.mxu0 %v1072
        %1076 = vmatprep.subr.bf16.mxu0 0
        %1077 = vmatpush1.bf16.msra.mxu0 0
        %1078 = vmatprep.subr.bf16.mxu0 0
        %1079 = vmatpush1.bf16.msra.mxu0 0
        %1080 = vmatprep.subr.bf16.mxu0 0
        %1081 = vmatpush1.bf16.msra.mxu0 0
        %1082 = vmatprep.subr.bf16.mxu0 0
        %1083 = vmatpush1.bf16.msra.mxu0 0
        %1084 = vmatprep.subr.bf16.mxu0 0
        %1085 = vmatpush1.bf16.msra.mxu0 0
        %1086 = vmatprep.subr.bf16.mxu0 0
        %1087 = vmatpush1.bf16.msra.mxu0 0
        %1088 = vmatprep.subr.bf16.mxu0 0
        %1089 = vmatpush1.bf16.msra.mxu0 0
        %1090 = vmatprep.subr.bf16.mxu0 0
        %1091 = vmatpush1.bf16.msra.mxu0 0
        %1092 = vmatprep.subr.bf16.mxu0 0
        %1093 = vmatpush1.bf16.msra.mxu0 0
        %1094 = vmatprep.subr.bf16.mxu0 0
        %1095 = vmatpush1.bf16.msra.mxu0 0
        %1096 = vmatprep.subr.bf16.mxu0 0
        %1097 = vmatpush1.bf16.msra.mxu0 0
        %1098 = vmatprep.subr.bf16.mxu0 0
        %1099 = vmatpush1.bf16.msra.mxu0 0
        %1100 = vmatprep.subr.bf16.mxu0 0
        %1101 = vmatpush1.bf16.msra.mxu0 0
        %1102 = vmatprep.subr.bf16.mxu0 0
        %1103 = vmatpush1.bf16.msra.mxu0 0
        %1104 = vmatprep.subr.bf16.mxu0 0
        %1105 = vmatpush1.bf16.msra.mxu0 0
        %1106 = vmatprep.mubr.bf16.mxu0 0
        %1107 = vmatmul.mubr.bf16.gmra.mrb[0].mxu0 %v1069
        %v1108 = vpop.f32.mrb[0].mxu0
        %v1109 = vadd.f32 0.0, %v1108
        %v1110 = vpop.f32.mrb[0].mxu0
        %v1111 = vpop.f32.mrb[0].mxu0
        %v1112 = vpop.f32.mrb[0].mxu0
        %1113 = vdwg.mxu0
        %v1114 = vadd.f32 %v954, %v1109
        %v1115 = vadd.f32 %v376, %v1114
        %v1116 = vld [vmem:[%s6] sm:$0x1]
        %v1118 = vlaneseq
        %v1119 = vshrl.u32 %v1118, 7
        %v1120 = vsub.s32 0, %v1119
        %v1121 = vrot.slane %v1116, %v1120
        %v1123 = vadd.f32 %v1115, %v1121
        %v1124 = vsel %vm377, %v1123, 0.0
        %1125 = vadd.xlane.f32.xlu0 %v1124
        %v1126 = vpop.xlane.xlu0 %1125
        %v1127 = vmul.f32 %v1126, %v381
        %v1128 = vsub.f32 %v1123, %v1127
        %v1129 = vmul.f32 %v1128, %v1128
        %v1130 = vsel %vm377, %v1129, 0.0
        %1131 = vadd.xlane.f32.xlu0 %v1130
        %v1132 = vpop.xlane.xlu0 %1131
        %v1133 = vmul.f32 %v1132, %v381
        %v1134 = vadd.f32 %v1133, 1e-05
        %v1135 = vrsqrt.pop %v1134
        %v1136 = vmul.f32 %v1128, %v1135
        %v1137 = vld [vmem:[%s7] sm:$0x1]
        %v1139 = vlaneseq
        %v1140 = vshrl.u32 %v1139, 7
        %v1141 = vsub.s32 0, %v1140
        %v1142 = vrot.slane %v1137, %v1141
        %v1144 = vmul.f32 %v1136, %v1142
        %v1145 = vld [vmem:[%s8] sm:$0x1]
        %v1147 = vlaneseq
        %v1148 = vshrl.u32 %v1147, 7
        %v1149 = vsub.s32 0, %v1148
        %v1150 = vrot.slane %v1145, %v1149
        %v1152 = vadd.f32 %v1144, %v1150
        %v1153 = vadd.f32 %v1123, %v1152
        %1154 = vst.msk [vmem:[%s374] sm:$0xff] %vm377, %v1153
        %s1155 = sand.u32 %s229, 1
        %s1156 = scalar_lea.sflag [#allocation4], %s1155
        %s1157 = sand.u32 %s229, 1
        %s1158 = smul.addr %s1157, 8
        %s1159 = scalar_lea.vmem [#allocation8], %s1158
        // Predicated region
        $region69: #{tpu_custom_call.1} parent=55 // pred_check
          %p1160 = pneg %p239
        $region70: #{tpu_custom_call.1} parent=55 // pred_check_branch
          %1162 = sbr.rel (%p1160) target = $region72
        $region71: #{tpu_custom_call.1} parent=55 // pred_region
          %s1164 = ssub.s32 128, 128
          %1165 = vsyncadd %s1156, %s1164
          %s1166 = smul.addr %s27, 128
          %s1167 = scalar_lea.hbm %s9, %s1166
          %s1169 = sshll.u32 %s1159, 4
          %s1170 = int_to_ptr.vmem [resolvable:$true] %s1169
          %1172 = dma.vmem_to_hbm [thread:$0]  %s1170, 128, %s1167, %s1156
        $region72: #{tpu_custom_call.1} parent=55 // pred_fallthru
          _
      $region56: #{tpu_custom_call.1} parent=5 // pred_fallthru
        _
      %p1173 = scmp.le.s32.totalorder 2, %s22
      // Predicated region
      $region73: #{tpu_custom_call.1} parent=5 // pred_check
        %p1174 = pneg %p1173
      $region74: #{tpu_custom_call.1} parent=5 // pred_check_branch
        %1176 = sbr.rel (%p1174) target = $region76
      $region75: #{tpu_custom_call.1} parent=5 // pred_region
        %s1177 = ssub.s32 %s22, 2
        // Predicated region
        $region77: #{tpu_custom_call.1} parent=75 // pred_check
          %p1178 = pneg %p245
        $region78: #{tpu_custom_call.1} parent=75 // pred_check_branch
          %1180 = sbr.rel (%p1178) target = $region80
        $region79: #{tpu_custom_call.1} parent=75 // pred_region
          %s1181 = sand.u32 %s230, 1
          %s1182 = scalar_lea.sflag [#allocation4], %s1181
          %s1183 = sand.u32 %s230, 1
          %s1184 = smul.addr %s1183, 8
          %s1185 = scalar_lea.vmem [#allocation8], %s1184
          %1186 = dma.done %s1182, 128
        $region80: #{tpu_custom_call.1} parent=75 // pred_fallthru
          _
      $region76: #{tpu_custom_call.1} parent=5 // pred_fallthru
        _
    $region6: #{tpu_custom_call.1} parent=1 // loop_footer
      %s26 = sadd.s32 1, %s22
    $region7: #{tpu_custom_call.1} parent=1 // loop_footer_branch
      %21 = sbr.rel target = $region3
    $region8: #{tpu_custom_call.1} parent=1 // loop_exit
      _
    %1187 = vsyncpa [#allocation3], 1
    %s1188 = scalar_lea.sflag [#allocation3], 1
    %1189 = vsyncpa %s1188, 1
    %1190 = vsyncpa [#allocation6], 1
    %1191 = vsyncpa [#allocation4], 1
    %s1192 = scalar_lea.sflag [#allocation4], 1
    %1193 = vsyncpa %s1192, 1

</llo_original>
